<compile_context>
chip_gen: v6e
topology: v6e:2x2x1
jax: 0.10.0
libtpu: 0.0.40
codegen_flags: <defaults>
</compile_context>

<pallas_src>
import jax
import jax.numpy as jnp
from jax.experimental import pallas as pl
from jax.experimental.pallas import tpu as pltpu

PAD_MAX = 4                      # largest conv padding (k=5 -> padding=4); shared slab pad
KSIZES = (3, 4, 5)


def _round_up(x, m):
    return (x + m - 1) // m * m


# ---------------------------------------------------------------------------
# Pallas kernel: one fused tap matmul + shift-add + max-pool + concat + fc
# ---------------------------------------------------------------------------
def _make_kernel(L, Lp, C):
    """L: sequence length; Lp: per-example padded slab length (mult of 8); C: padded channels."""
    n_taps = sum(KSIZES)                                       # 12

    def kernel(xp_ref, wcat_ref, bconv_ref, wfc_ref, bfc_ref, out_ref):
        rows = xp_ref.shape[0]
        bb = rows // Lp
        xflat = xp_ref[...]                                    # (bb*Lp, Ep) bf16
        # ONE wide MXU matmul covering every tap of every branch (N = 12*128 = 1536).
        P = jnp.dot(xflat, wcat_ref[...],
                    preferred_element_type=jnp.float32)        # (bb*Lp, 12*C) f32 accum
        P = P.reshape(bb, Lp, n_taps * C)

        pooled_parts = []
        col = 0
        for k in KSIZES:
            Lk = L + k - 1                                     # conv output length
            start = PAD_MAX + 1 - k                            # offset into shared pad-4 slab
            # Tap 0 slice, then static shifted-tap accumulation (lane slices at 128-multiples).
            conv = P[:, start:start + Lk, col * C:(col + 1) * C]
            for j in range(1, k):
                conv = conv + P[:, start + j:start + j + Lk,
                                (col + j) * C:(col + j + 1) * C]
            pooled_parts.append(jnp.max(conv, axis=1))         # max over time -> (bb, C)
            col += k

        pooled = jnp.concatenate(pooled_parts, axis=1)         # (bb, 3*C): lane offsets 0/128/256
        feat = jnp.maximum(pooled + bconv_ref[...], 0.0)       # bias + ReLU after max (exact)
        # dropout: identity at inference (eval mode)
        logits = jnp.dot(feat.astype(jnp.bfloat16), wfc_ref[...],
                         preferred_element_type=jnp.float32) + bfc_ref[...]
        out_ref[...] = logits.astype(out_ref.dtype)

    return kernel


def _choose_bb(B, L, Lp, Ep, C):
    """Pick the batch block so per-step live VMEM stays under a conservative budget."""
    n_taps = sum(KSIZES)
    per_ex = (Lp * n_taps * C * 4                  # fused matmul result (f32)
              + 2 * (L + KSIZES[-1] - 1) * C * 4   # conv accumulator + shifted slice (f32)
              + 2 * Lp * Ep * 2)                   # double-buffered bf16 input slab
    budget = 14 << 20                              # well under v7x's 64 MiB physical VMEM
    bb = (budget // per_ex) // 8 * 8
    bb = max(8, min(bb, 512))
    if B > 8:
        # Cap at ~ceil(B/2) so the "parallel" grid has >= 2 steps for v7x's two TensorCores.
        bb = min(bb, _round_up((B + 1) // 2, 8))
    else:
        bb = 8
    return bb


def textcnn_pallas(xp2d, wcat, bconv, wfc, bfc, *, L, Lp, Bp, bb):
    _, Ep = xp2d.shape
    NC = wfc.shape[1]
    C = bconv.shape[1] // len(KSIZES)
    return pl.pallas_call(
        _make_kernel(L, Lp, C),
        out_shape=jax.ShapeDtypeStruct((Bp, NC), jnp.float32),
        grid=(Bp // bb,),
        in_specs=[
            pl.BlockSpec((bb * Lp, Ep), lambda i: (i, 0)),     # padded embedding slab per block
            pl.BlockSpec(wcat.shape, lambda i: (0, 0)),        # fused tap weights: resident
            pl.BlockSpec(bconv.shape, lambda i: (0, 0)),
            pl.BlockSpec(wfc.shape, lambda i: (0, 0)),
            pl.BlockSpec(bfc.shape, lambda i: (0, 0)),
        ],
        out_specs=pl.BlockSpec((bb, NC), lambda i: (i, 0)),
        compiler_params=pltpu.CompilerParams(
            dimension_semantics=("parallel",),                 # batch blocks over v7x's 2 TCs
            vmem_limit_bytes=32 << 20),
    )(xp2d, wcat, bconv, wfc, bfc)


# ---------------------------------------------------------------------------
# JAX glue: embedding lookup, shared padding, fused weight repacking
# ---------------------------------------------------------------------------
def cnn_forward(tokens, params):
    """Pallas-backed forward pass of the PyTorch CNN module (eval mode)."""
    emb = params["embedding"][tokens]                          # (B, L, E) gather in plain JAX
    B, L, E = emb.shape
    n_filters = params["b1"].shape[0]
    n_class = params["bfc"].shape[0]
    C = _round_up(n_filters, 128)                              # 100 -> 128
    NC = _round_up(n_class, 128)                               # 4   -> 128
    Ep = _round_up(E, 16)                                      # 50  -> 64 (bf16 K alignment)
    Lp = _round_up(L + 2 * PAD_MAX, 8)

    bb = _choose_bb(B, L, Lp, Ep, C)
    Bp = _round_up(B, bb)                                      # zero-pad batch to a bb multiple

    # One shared zero-padded slab: batch -> Bp, time pad PAD_MAX/right-fill, emb dim -> Ep.
    xp = jnp.pad(emb, ((0, Bp - B), (PAD_MAX, Lp - L - PAD_MAX), (0, Ep - E)))
    xp2d = xp.astype(jnp.bfloat16).reshape(Bp * Lp, Ep)
    # TODO(synk): fold the embedding gather + zero-pad into the kernel (scalar-prefetch token
    # ids + row DMA) to skip materializing this slab in HBM; biggest relative win on v5e.

    # Fused tap weights: torch (n_filters, 1, k, E) -> per-tap (Ep, C) blocks, concatenated
    # along the output-channel axis into a single (Ep, 12*C) bf16 matrix.
    tap_blocks = []
    for k, wname in zip(KSIZES, ("w1", "w2", "w3")):
        w = params[wname].reshape(n_filters, k, E)
        w = jnp.transpose(w, (1, 2, 0))                        # (k, E, n_filters)
        w = jnp.pad(w, ((0, 0), (0, Ep - E), (0, C - n_filters)))
        tap_blocks.extend([w[j] for j in range(k)])
    wcat = jnp.concatenate(tap_blocks, axis=1).astype(jnp.bfloat16)   # (Ep, 12*C)

    # Conv biases padded per branch and concatenated to one (1, 3*C) f32 row.
    bconv = jnp.concatenate(
        [jnp.pad(params[b], (0, C - n_filters)) for b in ("b1", "b2", "b3")]
    ).reshape(1, len(KSIZES) * C).astype(jnp.float32)

    # fc: torch (n_class, 3*n_filters) -> (3*C, NC); zero rows for padded channels and
    # zero columns for padded classes so padding never leaks into the logits.
    wfc_t = params["wfc"]
    blocks = [jnp.pad(wfc_t[:, i * n_filters:(i + 1) * n_filters],
                      ((0, 0), (0, C - n_filters))) for i in range(len(KSIZES))]
    wfc = jnp.concatenate(blocks, axis=1).T                    # (3*C, n_class)
    wfc = jnp.pad(wfc, ((0, 0), (0, NC - n_class))).astype(jnp.bfloat16)
    bfc = jnp.pad(params["bfc"], (0, NC - n_class)).reshape(1, NC).astype(jnp.float32)
    # TODO(synk): on v7x only, optionally cast wcat/wfc to fp8 (with an accuracy gate) for the
    # fp8 MXU path; keep bf16 on v5e/v6e.

    out = textcnn_pallas(xp2d, wcat, bconv, wfc, bfc, L=L, Lp=Lp, Bp=Bp, bb=bb)
    return out[:B, :n_class]                                   # drop batch/class padding


# ---------------------------------------------------------------------------
# Pure-JAX reference with matching mixed precision (bf16 operands, f32 accumulation)
# ---------------------------------------------------------------------------
def cnn_forward_ref(tokens, params):
    hp = jax.lax.Precision.HIGHEST
    f32 = jnp.float32
    emb = params["embedding"][tokens].astype(jnp.bfloat16).astype(f32)
    B, L, E = emb.shape
    n_filters = params["b1"].shape[0]
    feats = []
    for k, wname, bname in zip(KSIZES, ("w1", "w2", "w3"), ("b1", "b2", "b3")):
        pad = k - 1
        xpad = jnp.pad(emb, ((0, 0), (pad, pad), (0, 0)))
        Lk = L + k - 1
        w = params[wname].astype(jnp.bfloat16).astype(f32).reshape(n_filters, k * E)
        cols = jnp.concatenate([xpad[:, t:t + Lk, :] for t in range(k)], axis=-1)
        h = jnp.einsum("blk,ck->blc", cols, w, precision=hp)
        h = jnp.maximum(h + params[bname][None, None, :], 0.0)
        feats.append(jnp.max(h, axis=1))
    feat = jnp.concatenate(feats, axis=1).astype(jnp.bfloat16).astype(f32)
    wfc = params["wfc"].astype(jnp.bfloat16).astype(f32)
    return jnp.dot(feat, wfc.T, precision=hp) + params["bfc"][None, :]


# ---------------------------------------------------------------------------
# Deterministic parameter construction + run
# ---------------------------------------------------------------------------
def make_params(key, vocab_size, embedding_dim, n_class, n_filters=100):
    ks = jax.random.split(key, 9)
    scale = 0.1
    return {
        "embedding": scale * jax.random.normal(ks[0], (vocab_size, embedding_dim), jnp.float32),
        "w1": scale * jax.random.normal(ks[1], (n_filters, 1, 3, embedding_dim), jnp.float32),
        "b1": scale * jax.random.normal(ks[2], (n_filters,), jnp.float32),
        "w2": scale * jax.random.normal(ks[3], (n_filters, 1, 4, embedding_dim), jnp.float32),
        "b2": scale * jax.random.normal(ks[4], (n_filters,), jnp.float32),
        "w3": scale * jax.random.normal(ks[5], (n_filters, 1, 5, embedding_dim), jnp.float32),
        "b3": scale * jax.random.normal(ks[6], (n_filters,), jnp.float32),
        "wfc": scale * jax.random.normal(ks[7], (n_class, 3 * n_filters), jnp.float32),
        "bfc": scale * jax.random.normal(ks[8], (n_class,), jnp.float32),
    }


if __name__ == "__main__":
    key = jax.random.PRNGKey(0)
    k_tok1, k_tok2, k_par = jax.random.split(key, 3)

    vocab_size, embedding_dim, n_class = 100, 50, 4
    params = make_params(k_par, vocab_size, embedding_dim, n_class)

    # Case 1: tiny shapes (B=2, L=8) -> single 8-example (padded) block.
    B1, L1 = 2, 8
    tok1 = jax.random.randint(k_tok1, (B1, L1), 0, vocab_size, dtype=jnp.int32)
    out1 = jax.block_until_ready(cnn_forward(tok1, params))
    ref1 = jax.block_until_ready(cnn_forward_ref(tok1, params))
    assert out1.shape == (B1, n_class)
    assert jnp.allclose(out1, ref1, atol=2e-3, rtol=2e-3), (
        f"case1 mismatch vs reference: max abs diff {jnp.max(jnp.abs(out1 - ref1))}")

    # Case 2: B>8 with L%8!=0 -> exercises batch padding and a >=2-step parallel grid.
    B2, L2 = 24, 11
    tok2 = jax.random.randint(k_tok2, (B2, L2), 0, vocab_size, dtype=jnp.int32)
    out2 = jax.block_until_ready(cnn_forward(tok2, params))
    ref2 = jax.block_until_ready(cnn_forward_ref(tok2, params))
    assert out2.shape == (B2, n_class)
    assert jnp.allclose(out2, ref2, atol=2e-3, rtol=2e-3), (
        f"case2 mismatch vs reference: max abs diff {jnp.max(jnp.abs(out2 - ref2))}")

    print("KERNEL_OK")
</pallas_src>

<mosaic_0001>
module attributes {stable_mosaic.version = 11 : i64} {
  func.func @kernel(%arg0: i32, %arg1: memref<128x64xbf16, #tpu.memory_space<vmem>>, %arg2: memref<64x1536xbf16, #tpu.memory_space<vmem>>, %arg3: memref<1x384xf32, #tpu.memory_space<vmem>>, %arg4: memref<384x128xbf16, #tpu.memory_space<vmem>>, %arg5: memref<1x128xf32, #tpu.memory_space<vmem>>, %arg6: memref<8x128xf32, #tpu.memory_space<vmem>>) attributes {dimension_semantics = [#tpu.dimension_semantics<parallel>], iteration_bounds = array<i64: 1>, scalar_prefetch = 0 : i64, scratch_operands = 0 : i64, tpu.core_type = #tpu.core_type<tc>, window_params = [{transform_indices = @transform_0, window_bounds = array<i64: 128, 64>}, {pipeline_mode = #tpu.pipeline_mode<synchronous>, transform_indices = @transform_1, window_bounds = array<i64: 64, 1536>}, {pipeline_mode = #tpu.pipeline_mode<synchronous>, transform_indices = @transform_2, window_bounds = array<i64: 1, 384>}, {pipeline_mode = #tpu.pipeline_mode<synchronous>, transform_indices = @transform_3, window_bounds = array<i64: 384, 128>}, {pipeline_mode = #tpu.pipeline_mode<synchronous>, transform_indices = @transform_4, window_bounds = array<i64: 1, 128>}, {transform_indices = @transform_5, window_bounds = array<i64: 8, 128>}]} {
    %c0 = arith.constant 0 : index
    %c0_0 = arith.constant 0 : index
    %0 = vector.load %arg1[%c0, %c0_0] : memref<128x64xbf16, #tpu.memory_space<vmem>>, vector<128x64xbf16>
    %c0_1 = arith.constant 0 : index
    %c0_2 = arith.constant 0 : index
    %1 = vector.load %arg2[%c0_1, %c0_2] : memref<64x1536xbf16, #tpu.memory_space<vmem>>, vector<64x1536xbf16>
    %cst = arith.constant dense<0.000000e+00> : vector<128x1536xf32>
    %2 = tpu.matmul %0, %1, %cst {dimension_numbers = #tpu.dot_dimension_numbers<[1], [0], [0], [1], [0, 0, 1, 1], [], []>} : vector<128x64xbf16>, vector<64x1536xbf16>, vector<128x1536xf32> -> vector<128x1536xf32>
    %3 = vector.shape_cast %2 : vector<128x1536xf32> to vector<8x16x1536xf32>
    %4 = vector.extract_strided_slice %3 {offsets = [0, 2, 0], sizes = [8, 10, 128], strides = [1, 1, 1]} : vector<8x16x1536xf32> to vector<8x10x128xf32>
    %5 = vector.extract_strided_slice %3 {offsets = [0, 3, 128], sizes = [8, 10, 128], strides = [1, 1, 1]} : vector<8x16x1536xf32> to vector<8x10x128xf32>
    %6 = arith.addf %4, %5 : vector<8x10x128xf32>
    %7 = vector.extract_strided_slice %3 {offsets = [0, 4, 256], sizes = [8, 10, 128], strides = [1, 1, 1]} : vector<8x16x1536xf32> to vector<8x10x128xf32>
    %8 = arith.addf %6, %7 : vector<8x10x128xf32>
    %cst_3 = arith.constant dense<0xFF800000> : vector<8x128xf32>
    %9 = vector.multi_reduction <maximumf>, %8, %cst_3 [1] : vector<8x10x128xf32> to vector<8x128xf32>
    %10 = vector.extract_strided_slice %3 {offsets = [0, 1, 384], sizes = [8, 11, 128], strides = [1, 1, 1]} : vector<8x16x1536xf32> to vector<8x11x128xf32>
    %11 = vector.extract_strided_slice %3 {offsets = [0, 2, 512], sizes = [8, 11, 128], strides = [1, 1, 1]} : vector<8x16x1536xf32> to vector<8x11x128xf32>
    %12 = arith.addf %10, %11 : vector<8x11x128xf32>
    %13 = vector.extract_strided_slice %3 {offsets = [0, 3, 640], sizes = [8, 11, 128], strides = [1, 1, 1]} : vector<8x16x1536xf32> to vector<8x11x128xf32>
    %14 = arith.addf %12, %13 : vector<8x11x128xf32>
    %15 = vector.extract_strided_slice %3 {offsets = [0, 4, 768], sizes = [8, 11, 128], strides = [1, 1, 1]} : vector<8x16x1536xf32> to vector<8x11x128xf32>
    %16 = arith.addf %14, %15 : vector<8x11x128xf32>
    %cst_4 = arith.constant dense<0xFF800000> : vector<8x128xf32>
    %17 = vector.multi_reduction <maximumf>, %16, %cst_4 [1] : vector<8x11x128xf32> to vector<8x128xf32>
    %18 = vector.extract_strided_slice %3 {offsets = [0, 0, 896], sizes = [8, 12, 128], strides = [1, 1, 1]} : vector<8x16x1536xf32> to vector<8x12x128xf32>
    %19 = vector.extract_strided_slice %3 {offsets = [0, 1, 1024], sizes = [8, 12, 128], strides = [1, 1, 1]} : vector<8x16x1536xf32> to vector<8x12x128xf32>
    %20 = arith.addf %18, %19 : vector<8x12x128xf32>
    %21 = vector.extract_strided_slice %3 {offsets = [0, 2, 1152], sizes = [8, 12, 128], strides = [1, 1, 1]} : vector<8x16x1536xf32> to vector<8x12x128xf32>
    %22 = arith.addf %20, %21 : vector<8x12x128xf32>
    %23 = vector.extract_strided_slice %3 {offsets = [0, 3, 1280], sizes = [8, 12, 128], strides = [1, 1, 1]} : vector<8x16x1536xf32> to vector<8x12x128xf32>
    %24 = arith.addf %22, %23 : vector<8x12x128xf32>
    %25 = vector.extract_strided_slice %3 {offsets = [0, 4, 1408], sizes = [8, 12, 128], strides = [1, 1, 1]} : vector<8x16x1536xf32> to vector<8x12x128xf32>
    %26 = arith.addf %24, %25 : vector<8x12x128xf32>
    %cst_5 = arith.constant dense<0xFF800000> : vector<8x128xf32>
    %27 = vector.multi_reduction <maximumf>, %26, %cst_5 [1] : vector<8x12x128xf32> to vector<8x128xf32>
    %28 = tpu.concatenate %9, %17, %27 in 1 : vector<8x128xf32>, vector<8x128xf32>, vector<8x128xf32> -> vector<8x384xf32>
    %c0_6 = arith.constant 0 : index
    %c0_7 = arith.constant 0 : index
    %29 = vector.load %arg3[%c0_6, %c0_7] : memref<1x384xf32, #tpu.memory_space<vmem>>, vector<1x384xf32>
    %30 = vector.broadcast %29 : vector<1x384xf32> to vector<8x384xf32>
    %31 = arith.addf %28, %30 : vector<8x384xf32>
    %cst_8 = arith.constant 0.000000e+00 : f32
    %32 = vector.broadcast %cst_8 : f32 to vector<8x384xf32>
    %33 = arith.maximumf %31, %32 : vector<8x384xf32>
    %34 = arith.truncf %33 : vector<8x384xf32> to vector<8x384xbf16>
    %c0_9 = arith.constant 0 : index
    %c0_10 = arith.constant 0 : index
    %35 = vector.load %arg4[%c0_9, %c0_10] : memref<384x128xbf16, #tpu.memory_space<vmem>>, vector<384x128xbf16>
    %cst_11 = arith.constant dense<0.000000e+00> : vector<8x128xf32>
    %36 = tpu.matmul %34, %35, %cst_11 {dimension_numbers = #tpu.dot_dimension_numbers<[1], [0], [0], [1], [0, 0, 1, 1], [], []>} : vector<8x384xbf16>, vector<384x128xbf16>, vector<8x128xf32> -> vector<8x128xf32>
    %c0_12 = arith.constant 0 : index
    %c0_13 = arith.constant 0 : index
    %37 = vector.load %arg5[%c0_12, %c0_13] : memref<1x128xf32, #tpu.memory_space<vmem>>, vector<1x128xf32>
    %38 = vector.broadcast %37 : vector<1x128xf32> to vector<8x128xf32>
    %39 = arith.addf %36, %38 : vector<8x128xf32>
    %c0_14 = arith.constant 0 : index
    %c0_15 = arith.constant 0 : index
    %40 = vector.load %arg6[%c0_14, %c0_15] : memref<8x128xf32, #tpu.memory_space<vmem>>, vector<8x128xf32>
    tpu.vector_store %arg6[%c0_14, %c0_15], %39 {strides = array<i32>} : memref<8x128xf32, #tpu.memory_space<vmem>>, vector<8x128xf32>,
    return
  }
  func.func @transform_0(%arg0: i32) -> (i32, i32) {
    %c0_i32 = arith.constant 0 : i32
    %c0_i32_0 = arith.constant 0 : i32
    return %arg0, %c0_i32 : i32, i32
  }
  func.func @transform_1(%arg0: i32) -> (i32, i32) {
    %c0_i32 = arith.constant 0 : i32
    %c0_i32_0 = arith.constant 0 : i32
    %c0_i32_1 = arith.constant 0 : i32
    return %c0_i32, %c0_i32_0 : i32, i32
  }
  func.func @transform_2(%arg0: i32) -> (i32, i32) {
    %c0_i32 = arith.constant 0 : i32
    %c0_i32_0 = arith.constant 0 : i32
    %c0_i32_1 = arith.constant 0 : i32
    return %c0_i32, %c0_i32_0 : i32, i32
  }
  func.func @transform_3(%arg0: i32) -> (i32, i32) {
    %c0_i32 = arith.constant 0 : i32
    %c0_i32_0 = arith.constant 0 : i32
    %c0_i32_1 = arith.constant 0 : i32
    return %c0_i32, %c0_i32_0 : i32, i32
  }
  func.func @transform_4(%arg0: i32) -> (i32, i32) {
    %c0_i32 = arith.constant 0 : i32
    %c0_i32_0 = arith.constant 0 : i32
    %c0_i32_1 = arith.constant 0 : i32
    return %c0_i32, %c0_i32_0 : i32, i32
  }
  func.func @transform_5(%arg0: i32) -> (i32, i32) {
    %c0_i32 = arith.constant 0 : i32
    %c0_i32_0 = arith.constant 0 : i32
    return %arg0, %c0_i32 : i32, i32
  }
}

</mosaic_0001>

<llo_original>
// kernel: tpu_custom_call.1
$region0: #{tpu_custom_call.1}
  #allocation0 [shape = 'u32[]', space=smem, size = 0x4, offset = 0x4, fixed_abs, tag = 'smem constant byte address 0x4 - core index']
  #allocation1 [shape = 'u32[144,128]{1,0:T(1,128)}', space=vmem, size = 0x12000, scoped, tag = 'internal scratch']
  %s0 = inlined_call_operand.vmem [shape: bf16[128,64], index: 0, kind: input, shape index: {}]
  %s1 = inlined_call_operand.hbm [shape: bf16[64,1536], index: 1, kind: input, shape index: {}]
  %s2 = inlined_call_operand.vmem [shape: f32[1,384], index: 2, kind: input, shape index: {}]
  %s3 = inlined_call_operand.hbm [shape: bf16[384,128], index: 3, kind: input, shape index: {}]
  %s4 = inlined_call_operand.vmem [shape: f32[1,128], index: 4, kind: input, shape index: {}]
  %s5 = inlined_call_operand.hbm [shape: f32[8,128], index: 5, kind: output, shape index: {}]
  %s6 = sld [smem:[#allocation0]]
  $region38: #{tpu_custom_call.1} parent=0
    _
  %s8 = ssub.s32 1, %s6
  %s9 = scalar_select 0, %s8, %s6
  $region1: #{tpu_custom_call.1} parent=0
    #allocation2 [shape = 'u8[196608]{0}', space=vmem, size = 0x30000, scoped, tag = 'input window, operand 1, single buffered']
    #allocation3 [shape = 's32[1]{0}', space=sflag, size = 0x4, scoped, tag = 'scoped memory for tpu_custom_call.1']
    #allocation4 [shape = 's32[1]{0}', space=sflag, size = 0x4, scoped, tag = 'scoped memory for tpu_custom_call.1']
    #allocation5 [shape = 'u8[98304]{0}', space=vmem, size = 0x18000, scoped, tag = 'input window, operand 3, single buffered']
    #allocation6 [shape = 's32[1]{0}', space=sflag, size = 0x4, scoped, tag = 'scoped memory for tpu_custom_call.1']
    #allocation7 [shape = 'u8[4096]{0}', space=vmem, size = 0x1000, scoped, tag = 'output window, operand 0, single buffered']
    %10 = vsyncpa [#allocation3], 0
    %11 = vsyncpa [#allocation6], 0
    %12 = vsyncpa [#allocation4], 0
    // Predicated region
    $region2: #{tpu_custom_call.1} parent=1 // pred_check
      _
    $region3: #{tpu_custom_call.1} parent=1 // pred_check_branch
      %14 = sbr.rel (0) target = $region5
    $region4: #{tpu_custom_call.1} parent=1 // pred_region
      _
    $region5: #{tpu_custom_call.1} parent=1 // pred_fallthru
      _
    // Predicated region
    $region6: #{tpu_custom_call.1} parent=1 // pred_check
      _
    $region7: #{tpu_custom_call.1} parent=1 // pred_check_branch
      %16 = sbr.rel (0) target = $region9
    $region8: #{tpu_custom_call.1} parent=1 // pred_region
      %s18 = ssub.s32 6144, 6144
      %19 = vsyncadd [#allocation3], %s18
      %s20 = sshll.u32 [#allocation2], 4
      %s21 = int_to_ptr.vmem [resolvable:$true] %s20
      %26 = dma.hbm_to_vmem [thread:$0]  %s1, 6144, %s21, [#allocation3], 768, 768, 48
    $region9: #{tpu_custom_call.1} parent=1 // pred_fallthru
      _
    // Predicated region
    $region10: #{tpu_custom_call.1} parent=1 // pred_check
      _
    $region11: #{tpu_custom_call.1} parent=1 // pred_check_branch
      %28 = sbr.rel (0) target = $region13
    $region12: #{tpu_custom_call.1} parent=1 // pred_region
      _
    $region13: #{tpu_custom_call.1} parent=1 // pred_fallthru
      _
    // Predicated region
    $region14: #{tpu_custom_call.1} parent=1 // pred_check
      _
    $region15: #{tpu_custom_call.1} parent=1 // pred_check_branch
      %30 = sbr.rel (0) target = $region17
    $region16: #{tpu_custom_call.1} parent=1 // pred_region
      %s32 = ssub.s32 3072, 3072
      %33 = vsyncadd [#allocation6], %s32
      %s34 = sshll.u32 [#allocation5], 4
      %s35 = int_to_ptr.vmem [resolvable:$true] %s34
      %40 = dma.hbm_to_vmem [thread:$0]  %s3, 3072, %s35, [#allocation6], 64, 64, 4
    $region17: #{tpu_custom_call.1} parent=1 // pred_fallthru
      _
    // Predicated region
    $region18: #{tpu_custom_call.1} parent=1 // pred_check
      _
    $region19: #{tpu_custom_call.1} parent=1 // pred_check_branch
      %42 = sbr.rel (0) target = $region21
    $region20: #{tpu_custom_call.1} parent=1 // pred_region
      _
    $region21: #{tpu_custom_call.1} parent=1 // pred_fallthru
      _
    // Predicated region
    $region22: #{tpu_custom_call.1} parent=1 // pred_check
      _
    $region23: #{tpu_custom_call.1} parent=1 // pred_check_branch
      %44 = sbr.rel (0) target = $region25
    $region24: #{tpu_custom_call.1} parent=1 // pred_region
      %45 = dma.done [#allocation3], 6144
    $region25: #{tpu_custom_call.1} parent=1 // pred_fallthru
      _
    // Predicated region
    $region26: #{tpu_custom_call.1} parent=1 // pred_check
      _
    $region27: #{tpu_custom_call.1} parent=1 // pred_check_branch
      %47 = sbr.rel (0) target = $region29
    $region28: #{tpu_custom_call.1} parent=1 // pred_region
      %48 = dma.done [#allocation6], 3072
    $region29: #{tpu_custom_call.1} parent=1 // pred_fallthru
      _
    %v50 = vld [vmem:[%s0] sm:$0xf]
    %v51 = vld [vmem:[%s0 + $0x4] sm:$0xf]
    %v52 = vld [vmem:[%s0 + $0x8] sm:$0xf]
    %v53 = vld [vmem:[%s0 + $0xc] sm:$0xf]
    %v54 = vld [vmem:[%s0 + $0x10] sm:$0xf]
    %v55 = vld [vmem:[%s0 + $0x14] sm:$0xf]
    %v56 = vld [vmem:[%s0 + $0x18] sm:$0xf]
    %v57 = vld [vmem:[%s0 + $0x1c] sm:$0xf]
    %v58 = vld [vmem:[%s0 + $0x20] sm:$0xf]
    %v59 = vld [vmem:[%s0 + $0x24] sm:$0xf]
    %v60 = vld [vmem:[%s0 + $0x28] sm:$0xf]
    %v61 = vld [vmem:[%s0 + $0x2c] sm:$0xf]
    %v62 = vld [vmem:[%s0 + $0x30] sm:$0xf]
    %v63 = vld [vmem:[%s0 + $0x34] sm:$0xf]
    %v64 = vld [vmem:[%s0 + $0x38] sm:$0xf]
    %v65 = vld [vmem:[%s0 + $0x3c] sm:$0xf]
    %v66 = vld [vmem:[#allocation2] sm:$0xff]
    %v67 = vld [vmem:[#allocation2 + $0x8] sm:$0xff]
    %v68 = vld [vmem:[#allocation2 + $0x10] sm:$0xff]
    %v69 = vld [vmem:[#allocation2 + $0x18] sm:$0xff]
    %v70 = vld [vmem:[#allocation2 + $0x20] sm:$0xff]
    %v71 = vld [vmem:[#allocation2 + $0x28] sm:$0xff]
    %v72 = vld [vmem:[#allocation2 + $0x30] sm:$0xff]
    %v73 = vld [vmem:[#allocation2 + $0x38] sm:$0xff]
    %v74 = vld [vmem:[#allocation2 + $0x40] sm:$0xff]
    %v75 = vld [vmem:[#allocation2 + $0x48] sm:$0xff]
    %v76 = vld [vmem:[#allocation2 + $0x50] sm:$0xff]
    %v77 = vld [vmem:[#allocation2 + $0x58] sm:$0xff]
    %v78 = vld [vmem:[#allocation2 + $0x60] sm:$0xff]
    %v79 = vld [vmem:[#allocation2 + $0x68] sm:$0xff]
    %v80 = vld [vmem:[#allocation2 + $0x70] sm:$0xff]
    %v81 = vld [vmem:[#allocation2 + $0x78] sm:$0xff]
    %v82 = vld [vmem:[#allocation2 + $0x80] sm:$0xff]
    %v83 = vld [vmem:[#allocation2 + $0x88] sm:$0xff]
    %v84 = vld [vmem:[#allocation2 + $0x90] sm:$0xff]
    %v85 = vld [vmem:[#allocation2 + $0x98] sm:$0xff]
    %v86 = vld [vmem:[#allocation2 + $0xa0] sm:$0xff]
    %v87 = vld [vmem:[#allocation2 + $0xa8] sm:$0xff]
    %v88 = vld [vmem:[#allocation2 + $0xb0] sm:$0xff]
    %v89 = vld [vmem:[#allocation2 + $0xb8] sm:$0xff]
    %v90 = vld [vmem:[#allocation2 + $0xc0] sm:$0xff]
    %v91 = vld [vmem:[#allocation2 + $0xc8] sm:$0xff]
    %v92 = vld [vmem:[#allocation2 + $0xd0] sm:$0xff]
    %v93 = vld [vmem:[#allocation2 + $0xd8] sm:$0xff]
    %v94 = vld [vmem:[#allocation2 + $0xe0] sm:$0xff]
    %v95 = vld [vmem:[#allocation2 + $0xe8] sm:$0xff]
    %v96 = vld [vmem:[#allocation2 + $0xf0] sm:$0xff]
    %v97 = vld [vmem:[#allocation2 + $0xf8] sm:$0xff]
    %v98 = vld [vmem:[#allocation2 + $0x100] sm:$0xff]
    %v99 = vld [vmem:[#allocation2 + $0x108] sm:$0xff]
    %v100 = vld [vmem:[#allocation2 + $0x110] sm:$0xff]
    %v101 = vld [vmem:[#allocation2 + $0x118] sm:$0xff]
    %v102 = vld [vmem:[#allocation2 + $0x120] sm:$0xff]
    %v103 = vld [vmem:[#allocation2 + $0x128] sm:$0xff]
    %v104 = vld [vmem:[#allocation2 + $0x130] sm:$0xff]
    %v105 = vld [vmem:[#allocation2 + $0x138] sm:$0xff]
    %v106 = vld [vmem:[#allocation2 + $0x140] sm:$0xff]
    %v107 = vld [vmem:[#allocation2 + $0x148] sm:$0xff]
    %v108 = vld [vmem:[#allocation2 + $0x150] sm:$0xff]
    %v109 = vld [vmem:[#allocation2 + $0x158] sm:$0xff]
    %v110 = vld [vmem:[#allocation2 + $0x160] sm:$0xff]
    %v111 = vld [vmem:[#allocation2 + $0x168] sm:$0xff]
    %v112 = vld [vmem:[#allocation2 + $0x170] sm:$0xff]
    %v113 = vld [vmem:[#allocation2 + $0x178] sm:$0xff]
    %v130 = vunpack.c.l.b16 %v50
    %v131 = vunpack.c.l.b16 %v51
    %v132 = vunpack.c.l.b16 %v52
    %v133 = vunpack.c.l.b16 %v53
    %v134 = vunpack.c.l.b16 %v54
    %v135 = vunpack.c.l.b16 %v55
    %v136 = vunpack.c.l.b16 %v56
    %v137 = vunpack.c.l.b16 %v57
    %v138 = vunpack.c.l.b16 %v58
    %v139 = vunpack.c.l.b16 %v59
    %v140 = vunpack.c.l.b16 %v60
    %v141 = vunpack.c.l.b16 %v61
    %v142 = vunpack.c.l.b16 %v62
    %v143 = vunpack.c.l.b16 %v63
    %v144 = vunpack.c.l.b16 %v64
    %v145 = vunpack.c.l.b16 %v65
    %v146 = vpack.c.b16 %v131, %v130
    %v147 = vpack.c.b16 %v133, %v132
    %v148 = vpack.c.b16 %v135, %v134
    %v149 = vpack.c.b16 %v137, %v136
    %v150 = vpack.c.b16 %v139, %v138
    %v151 = vpack.c.b16 %v141, %v140
    %v152 = vpack.c.b16 %v143, %v142
    %v153 = vpack.c.b16 %v145, %v144
    %v202 = vunpack.c.l.b16 %v66
    %v203 = vunpack.c.h.b16 %v66
    %v204 = vunpack.c.l.b16 %v67
    %v205 = vunpack.c.h.b16 %v67
    %v206 = vunpack.c.l.b16 %v68
    %v207 = vunpack.c.h.b16 %v68
    %v208 = vunpack.c.l.b16 %v69
    %v209 = vunpack.c.h.b16 %v69
    %v210 = vunpack.c.l.b16 %v70
    %v211 = vunpack.c.h.b16 %v70
    %v212 = vunpack.c.l.b16 %v71
    %v213 = vunpack.c.h.b16 %v71
    %v214 = vunpack.c.l.b16 %v72
    %v215 = vunpack.c.h.b16 %v72
    %v216 = vunpack.c.l.b16 %v73
    %v217 = vunpack.c.h.b16 %v73
    %v218 = vunpack.c.l.b16 %v74
    %v219 = vunpack.c.h.b16 %v74
    %v220 = vunpack.c.l.b16 %v75
    %v221 = vunpack.c.h.b16 %v75
    %v222 = vunpack.c.l.b16 %v76
    %v223 = vunpack.c.h.b16 %v76
    %v224 = vunpack.c.l.b16 %v77
    %v225 = vunpack.c.h.b16 %v77
    %v226 = vunpack.c.l.b16 %v78
    %v227 = vunpack.c.h.b16 %v78
    %v228 = vunpack.c.l.b16 %v79
    %v229 = vunpack.c.h.b16 %v79
    %v230 = vunpack.c.l.b16 %v80
    %v231 = vunpack.c.h.b16 %v80
    %v232 = vunpack.c.l.b16 %v81
    %v233 = vunpack.c.h.b16 %v81
    %v234 = vunpack.c.l.b16 %v82
    %v235 = vunpack.c.h.b16 %v82
    %v236 = vunpack.c.l.b16 %v83
    %v237 = vunpack.c.h.b16 %v83
    %v238 = vunpack.c.l.b16 %v84
    %v239 = vunpack.c.h.b16 %v84
    %v240 = vunpack.c.l.b16 %v85
    %v241 = vunpack.c.h.b16 %v85
    %v242 = vunpack.c.l.b16 %v86
    %v243 = vunpack.c.h.b16 %v86
    %v244 = vunpack.c.l.b16 %v87
    %v245 = vunpack.c.h.b16 %v87
    %v246 = vunpack.c.l.b16 %v88
    %v247 = vunpack.c.h.b16 %v88
    %v248 = vunpack.c.l.b16 %v89
    %v249 = vunpack.c.h.b16 %v89
    %v250 = vunpack.c.l.b16 %v90
    %v251 = vunpack.c.h.b16 %v90
    %v252 = vunpack.c.l.b16 %v91
    %v253 = vunpack.c.h.b16 %v91
    %v254 = vunpack.c.l.b16 %v92
    %v255 = vunpack.c.h.b16 %v92
    %v256 = vunpack.c.l.b16 %v93
    %v257 = vunpack.c.h.b16 %v93
    %v258 = vunpack.c.l.b16 %v94
    %v259 = vunpack.c.h.b16 %v94
    %v260 = vunpack.c.l.b16 %v95
    %v261 = vunpack.c.h.b16 %v95
    %v262 = vunpack.c.l.b16 %v96
    %v263 = vunpack.c.h.b16 %v96
    %v264 = vunpack.c.l.b16 %v97
    %v265 = vunpack.c.h.b16 %v97
    %v266 = vunpack.c.l.b16 %v98
    %v267 = vunpack.c.h.b16 %v98
    %v268 = vunpack.c.l.b16 %v99
    %v269 = vunpack.c.h.b16 %v99
    %v270 = vunpack.c.l.b16 %v100
    %v271 = vunpack.c.h.b16 %v100
    %v272 = vunpack.c.l.b16 %v101
    %v273 = vunpack.c.h.b16 %v101
    %v274 = vunpack.c.l.b16 %v102
    %v275 = vunpack.c.h.b16 %v102
    %v276 = vunpack.c.l.b16 %v103
    %v277 = vunpack.c.h.b16 %v103
    %v278 = vunpack.c.l.b16 %v104
    %v279 = vunpack.c.h.b16 %v104
    %v280 = vunpack.c.l.b16 %v105
    %v281 = vunpack.c.h.b16 %v105
    %v282 = vunpack.c.l.b16 %v106
    %v283 = vunpack.c.h.b16 %v106
    %v284 = vunpack.c.l.b16 %v107
    %v285 = vunpack.c.h.b16 %v107
    %v286 = vunpack.c.l.b16 %v108
    %v287 = vunpack.c.h.b16 %v108
    %v288 = vunpack.c.l.b16 %v109
    %v289 = vunpack.c.h.b16 %v109
    %v290 = vunpack.c.l.b16 %v110
    %v291 = vunpack.c.h.b16 %v110
    %v292 = vunpack.c.l.b16 %v111
    %v293 = vunpack.c.h.b16 %v111
    %v294 = vunpack.c.l.b16 %v112
    %v295 = vunpack.c.h.b16 %v112
    %v296 = vunpack.c.l.b16 %v113
    %v297 = vunpack.c.h.b16 %v113
    %v298 = vpack.c.b16 %v214, %v202
    %v299 = vpack.c.b16 %v215, %v203
    %v300 = vpack.c.b16 %v216, %v204
    %v301 = vpack.c.b16 %v217, %v205
    %v302 = vpack.c.b16 %v218, %v206
    %v303 = vpack.c.b16 %v219, %v207
    %v304 = vpack.c.b16 %v220, %v208
    %v305 = vpack.c.b16 %v221, %v209
    %v306 = vpack.c.b16 %v222, %v210
    %v307 = vpack.c.b16 %v223, %v211
    %v308 = vpack.c.b16 %v224, %v212
    %v309 = vpack.c.b16 %v225, %v213
    %v310 = vpack.c.b16 %v238, %v226
    %v311 = vpack.c.b16 %v239, %v227
    %v312 = vpack.c.b16 %v240, %v228
    %v313 = vpack.c.b16 %v241, %v229
    %v314 = vpack.c.b16 %v242, %v230
    %v315 = vpack.c.b16 %v243, %v231
    %v316 = vpack.c.b16 %v244, %v232
    %v317 = vpack.c.b16 %v245, %v233
    %v318 = vpack.c.b16 %v246, %v234
    %v319 = vpack.c.b16 %v247, %v235
    %v320 = vpack.c.b16 %v248, %v236
    %v321 = vpack.c.b16 %v249, %v237
    %v322 = vpack.c.b16 %v262, %v250
    %v323 = vpack.c.b16 %v263, %v251
    %v324 = vpack.c.b16 %v264, %v252
    %v325 = vpack.c.b16 %v265, %v253
    %v326 = vpack.c.b16 %v266, %v254
    %v327 = vpack.c.b16 %v267, %v255
    %v328 = vpack.c.b16 %v268, %v256
    %v329 = vpack.c.b16 %v269, %v257
    %v330 = vpack.c.b16 %v270, %v258
    %v331 = vpack.c.b16 %v271, %v259
    %v332 = vpack.c.b16 %v272, %v260
    %v333 = vpack.c.b16 %v273, %v261
    %v334 = vpack.c.b16 %v286, %v274
    %v335 = vpack.c.b16 %v287, %v275
    %v336 = vpack.c.b16 %v288, %v276
    %v337 = vpack.c.b16 %v289, %v277
    %v338 = vpack.c.b16 %v290, %v278
    %v339 = vpack.c.b16 %v291, %v279
    %v340 = vpack.c.b16 %v292, %v280
    %v341 = vpack.c.b16 %v293, %v281
    %v342 = vpack.c.b16 %v294, %v282
    %v343 = vpack.c.b16 %v295, %v283
    %v344 = vpack.c.b16 %v296, %v284
    %v345 = vpack.c.b16 %v297, %v285
    %vm394 = vcmask 523264
    %v396 = vsel %vm394, %v146, 0
    %v399 = vsel %vm394, %v147, 0
    %v402 = vsel %vm394, %v148, 0
    %v405 = vsel %vm394, %v149, 0
    %v408 = vsel %vm394, %v150, 0
    %v411 = vsel %vm394, %v151, 0
    %v414 = vsel %vm394, %v152, 0
    %v417 = vsel %vm394, %v153, 0
    %419 = vmatprep.subr.bf16.mxu0 0
    %420 = vmatpush1.bf16.msra.mxu0 0
    %421 = vmatprep.subr.bf16.mxu0 0
    %422 = vmatpush1.bf16.msra.mxu0 0
    %423 = vmatprep.subr.bf16.mxu0 0
    %424 = vmatpush1.bf16.msra.mxu0 0
    %425 = vmatprep.subr.bf16.mxu0 0
    %426 = vmatpush1.bf16.msra.mxu0 0
    %427 = vmatprep.subr.bf16.mxu0 %v335
    %428 = vmatpush1.bf16.msra.mxu0 %v334
    %429 = vmatprep.subr.bf16.mxu0 %v323
    %430 = vmatpush1.bf16.msra.mxu0 %v322
    %431 = vmatprep.subr.bf16.mxu0 %v311
    %432 = vmatpush1.bf16.msra.mxu0 %v310
    %433 = vmatprep.subr.bf16.mxu0 %v299
    %434 = vmatpush1.bf16.msra.mxu0 %v298
    %435 = vmatprep.subr.bf16.mxu0 0
    %436 = vmatpush2.bf16.msra.mxu0 0
    %437 = vmatprep.subr.bf16.mxu0 0
    %438 = vmatpush2.bf16.msra.mxu0 0
    %439 = vmatprep.subr.bf16.mxu0 0
    %440 = vmatpush2.bf16.msra.mxu0 0
    %441 = vmatprep.subr.bf16.mxu0 0
    %442 = vmatpush2.bf16.msra.mxu0 0
    %443 = vmatprep.subr.bf16.mxu0 0
    %444 = vmatpush2.bf16.msra.mxu0 0
    %445 = vmatprep.subr.bf16.mxu0 0
    %446 = vmatpush2.bf16.msra.mxu0 0
    %447 = vmatprep.subr.bf16.mxu0 0
    %448 = vmatpush2.bf16.msra.mxu0 0
    %449 = vmatprep.subr.bf16.mxu0 0
    %450 = vmatpush2.bf16.msra.mxu0 0
    %451 = vmatprep.mubr.bf16.mxu0 0
    %452 = vmatmul.mubr.bf16.gmra.mxu0 %v396
    %v453 = vpop.f32.mrf.mxu0
    %v454 = vadd.f32 0.0, %v453
    %v455 = vpop.f32.mrf.mxu0
    %v456 = vadd.f32 0.0, %v455
    %v457 = vpop.f32.mrf.mxu0
    %v458 = vadd.f32 0.0, %v457
    %v459 = vpop.f32.mrf.mxu0
    %v460 = vadd.f32 0.0, %v459
    %461 = vmatprep.mubr.bf16.mxu0 0
    %462 = vmatmul.mubr.bf16.gmra.mxu0 %v399
    %v463 = vpop.f32.mrf.mxu0
    %v464 = vadd.f32 0.0, %v463
    %v465 = vpop.f32.mrf.mxu0
    %v466 = vadd.f32 0.0, %v465
    %v467 = vpop.f32.mrf.mxu0
    %v468 = vadd.f32 0.0, %v467
    %v469 = vpop.f32.mrf.mxu0
    %v470 = vadd.f32 0.0, %v469
    %471 = vmatprep.mubr.bf16.mxu0 0
    %472 = vmatmul.mubr.bf16.gmra.mxu0 %v402
    %v473 = vpop.f32.mrf.mxu0
    %v474 = vadd.f32 0.0, %v473
    %v475 = vpop.f32.mrf.mxu0
    %v476 = vadd.f32 0.0, %v475
    %v477 = vpop.f32.mrf.mxu0
    %v478 = vadd.f32 0.0, %v477
    %v479 = vpop.f32.mrf.mxu0
    %v480 = vadd.f32 0.0, %v479
    %481 = vmatprep.mubr.bf16.mxu0 0
    %482 = vmatmul.mubr.bf16.gmra.mxu0 %v405
    %v483 = vpop.f32.mrf.mxu0
    %v484 = vadd.f32 0.0, %v483
    %v485 = vpop.f32.mrf.mxu0
    %v486 = vadd.f32 0.0, %v485
    %v487 = vpop.f32.mrf.mxu0
    %v488 = vadd.f32 0.0, %v487
    %v489 = vpop.f32.mrf.mxu0
    %v490 = vadd.f32 0.0, %v489
    %491 = vmatprep.mubr.bf16.mxu0 0
    %492 = vmatmul.mubr.bf16.gmra.mxu0 %v408
    %v493 = vpop.f32.mrf.mxu0
    %v494 = vadd.f32 0.0, %v493
    %v495 = vpop.f32.mrf.mxu0
    %v496 = vadd.f32 0.0, %v495
    %v497 = vpop.f32.mrf.mxu0
    %v498 = vadd.f32 0.0, %v497
    %v499 = vpop.f32.mrf.mxu0
    %v500 = vadd.f32 0.0, %v499
    %501 = vmatprep.mubr.bf16.mxu0 0
    %502 = vmatmul.mubr.bf16.gmra.mxu0 %v411
    %v503 = vpop.f32.mrf.mxu0
    %v504 = vadd.f32 0.0, %v503
    %v505 = vpop.f32.mrf.mxu0
    %v506 = vadd.f32 0.0, %v505
    %v507 = vpop.f32.mrf.mxu0
    %v508 = vadd.f32 0.0, %v507
    %v509 = vpop.f32.mrf.mxu0
    %v510 = vadd.f32 0.0, %v509
    %511 = vmatprep.mubr.bf16.mxu0 0
    %512 = vmatmul.mubr.bf16.gmra.mxu0 %v414
    %v513 = vpop.f32.mrf.mxu0
    %v514 = vadd.f32 0.0, %v513
    %v515 = vpop.f32.mrf.mxu0
    %v516 = vadd.f32 0.0, %v515
    %v517 = vpop.f32.mrf.mxu0
    %v518 = vadd.f32 0.0, %v517
    %v519 = vpop.f32.mrf.mxu0
    %v520 = vadd.f32 0.0, %v519
    %521 = vmatprep.mubr.bf16.mxu0 0
    %522 = vmatmul.mubr.bf16.gmra.mxu0 %v417
    %v523 = vpop.f32.mrf.mxu0
    %v524 = vadd.f32 0.0, %v523
    %v525 = vpop.f32.mrf.mxu0
    %v526 = vadd.f32 0.0, %v525
    %v527 = vpop.f32.mrf.mxu0
    %v528 = vadd.f32 0.0, %v527
    %v529 = vpop.f32.mrf.mxu0
    %v530 = vadd.f32 0.0, %v529
    %531 = vdwg.mxu0
    %532 = vmatprep.subr.bf16.mxu0 0
    %533 = vmatpush1.bf16.msra.mxu0 0
    %534 = vmatprep.subr.bf16.mxu0 0
    %535 = vmatpush1.bf16.msra.mxu0 0
    %536 = vmatprep.subr.bf16.mxu0 0
    %537 = vmatpush1.bf16.msra.mxu0 0
    %538 = vmatprep.subr.bf16.mxu0 0
    %539 = vmatpush1.bf16.msra.mxu0 0
    %540 = vmatprep.subr.bf16.mxu0 %v337
    %541 = vmatpush1.bf16.msra.mxu0 %v336
    %542 = vmatprep.subr.bf16.mxu0 %v325
    %543 = vmatpush1.bf16.msra.mxu0 %v324
    %544 = vmatprep.subr.bf16.mxu0 %v313
    %545 = vmatpush1.bf16.msra.mxu0 %v312
    %546 = vmatprep.subr.bf16.mxu0 %v301
    %547 = vmatpush1.bf16.msra.mxu0 %v300
    %548 = vmatprep.subr.bf16.mxu0 0
    %549 = vmatpush2.bf16.msra.mxu0 0
    %550 = vmatprep.subr.bf16.mxu0 0
    %551 = vmatpush2.bf16.msra.mxu0 0
    %552 = vmatprep.subr.bf16.mxu0 0
    %553 = vmatpush2.bf16.msra.mxu0 0
    %554 = vmatprep.subr.bf16.mxu0 0
    %555 = vmatpush2.bf16.msra.mxu0 0
    %556 = vmatprep.subr.bf16.mxu0 0
    %557 = vmatpush2.bf16.msra.mxu0 0
    %558 = vmatprep.subr.bf16.mxu0 0
    %559 = vmatpush2.bf16.msra.mxu0 0
    %560 = vmatprep.subr.bf16.mxu0 0
    %561 = vmatpush2.bf16.msra.mxu0 0
    %562 = vmatprep.subr.bf16.mxu0 0
    %563 = vmatpush2.bf16.msra.mxu0 0
    %564 = vmatprep.mubr.bf16.mxu0 0
    %565 = vmatmul.mubr.bf16.gmra.mxu0 %v396
    %v566 = vpop.f32.mrf.mxu0
    %v567 = vadd.f32 0.0, %v566
    %v568 = vpop.f32.mrf.mxu0
    %v569 = vadd.f32 0.0, %v568
    %v570 = vpop.f32.mrf.mxu0
    %v571 = vadd.f32 0.0, %v570
    %v572 = vpop.f32.mrf.mxu0
    %v573 = vadd.f32 0.0, %v572
    %574 = vmatprep.mubr.bf16.mxu0 0
    %575 = vmatmul.mubr.bf16.gmra.mxu0 %v399
    %v576 = vpop.f32.mrf.mxu0
    %v577 = vadd.f32 0.0, %v576
    %v578 = vpop.f32.mrf.mxu0
    %v579 = vadd.f32 0.0, %v578
    %v580 = vpop.f32.mrf.mxu0
    %v581 = vadd.f32 0.0, %v580
    %v582 = vpop.f32.mrf.mxu0
    %v583 = vadd.f32 0.0, %v582
    %584 = vmatprep.mubr.bf16.mxu0 0
    %585 = vmatmul.mubr.bf16.gmra.mxu0 %v402
    %v586 = vpop.f32.mrf.mxu0
    %v587 = vadd.f32 0.0, %v586
    %v588 = vpop.f32.mrf.mxu0
    %v589 = vadd.f32 0.0, %v588
    %v590 = vpop.f32.mrf.mxu0
    %v591 = vadd.f32 0.0, %v590
    %v592 = vpop.f32.mrf.mxu0
    %v593 = vadd.f32 0.0, %v592
    %594 = vmatprep.mubr.bf16.mxu0 0
    %595 = vmatmul.mubr.bf16.gmra.mxu0 %v405
    %v596 = vpop.f32.mrf.mxu0
    %v597 = vadd.f32 0.0, %v596
    %v598 = vpop.f32.mrf.mxu0
    %v599 = vadd.f32 0.0, %v598
    %v600 = vpop.f32.mrf.mxu0
    %v601 = vadd.f32 0.0, %v600
    %v602 = vpop.f32.mrf.mxu0
    %v603 = vadd.f32 0.0, %v602
    %604 = vmatprep.mubr.bf16.mxu0 0
    %605 = vmatmul.mubr.bf16.gmra.mxu0 %v408
    %v606 = vpop.f32.mrf.mxu0
    %v607 = vadd.f32 0.0, %v606
    %v608 = vpop.f32.mrf.mxu0
    %v609 = vadd.f32 0.0, %v608
    %v610 = vpop.f32.mrf.mxu0
    %v611 = vadd.f32 0.0, %v610
    %v612 = vpop.f32.mrf.mxu0
    %v613 = vadd.f32 0.0, %v612
    %614 = vmatprep.mubr.bf16.mxu0 0
    %615 = vmatmul.mubr.bf16.gmra.mxu0 %v411
    %v616 = vpop.f32.mrf.mxu0
    %v617 = vadd.f32 0.0, %v616
    %v618 = vpop.f32.mrf.mxu0
    %v619 = vadd.f32 0.0, %v618
    %v620 = vpop.f32.mrf.mxu0
    %v621 = vadd.f32 0.0, %v620
    %v622 = vpop.f32.mrf.mxu0
    %v623 = vadd.f32 0.0, %v622
    %624 = vmatprep.mubr.bf16.mxu0 0
    %625 = vmatmul.mubr.bf16.gmra.mxu0 %v414
    %v626 = vpop.f32.mrf.mxu0
    %v627 = vadd.f32 0.0, %v626
    %v628 = vpop.f32.mrf.mxu0
    %v629 = vadd.f32 0.0, %v628
    %v630 = vpop.f32.mrf.mxu0
    %v631 = vadd.f32 0.0, %v630
    %v632 = vpop.f32.mrf.mxu0
    %v633 = vadd.f32 0.0, %v632
    %634 = vmatprep.mubr.bf16.mxu0 0
    %635 = vmatmul.mubr.bf16.gmra.mxu0 %v417
    %v636 = vpop.f32.mrf.mxu0
    %v637 = vadd.f32 0.0, %v636
    %v638 = vpop.f32.mrf.mxu0
    %v639 = vadd.f32 0.0, %v638
    %v640 = vpop.f32.mrf.mxu0
    %v641 = vadd.f32 0.0, %v640
    %v642 = vpop.f32.mrf.mxu0
    %v643 = vadd.f32 0.0, %v642
    %644 = vdwg.mxu0
    %645 = vmatprep.subr.bf16.mxu0 0
    %646 = vmatpush1.bf16.msra.mxu0 0
    %647 = vmatprep.subr.bf16.mxu0 0
    %648 = vmatpush1.bf16.msra.mxu0 0
    %649 = vmatprep.subr.bf16.mxu0 0
    %650 = vmatpush1.bf16.msra.mxu0 0
    %651 = vmatprep.subr.bf16.mxu0 0
    %652 = vmatpush1.bf16.msra.mxu0 0
    %653 = vmatprep.subr.bf16.mxu0 %v339
    %654 = vmatpush1.bf16.msra.mxu0 %v338
    %655 = vmatprep.subr.bf16.mxu0 %v327
    %656 = vmatpush1.bf16.msra.mxu0 %v326
    %657 = vmatprep.subr.bf16.mxu0 %v315
    %658 = vmatpush1.bf16.msra.mxu0 %v314
    %659 = vmatprep.subr.bf16.mxu0 %v303
    %660 = vmatpush1.bf16.msra.mxu0 %v302
    %661 = vmatprep.subr.bf16.mxu0 0
    %662 = vmatpush2.bf16.msra.mxu0 0
    %663 = vmatprep.subr.bf16.mxu0 0
    %664 = vmatpush2.bf16.msra.mxu0 0
    %665 = vmatprep.subr.bf16.mxu0 0
    %666 = vmatpush2.bf16.msra.mxu0 0
    %667 = vmatprep.subr.bf16.mxu0 0
    %668 = vmatpush2.bf16.msra.mxu0 0
    %669 = vmatprep.subr.bf16.mxu0 0
    %670 = vmatpush2.bf16.msra.mxu0 0
    %671 = vmatprep.subr.bf16.mxu0 0
    %672 = vmatpush2.bf16.msra.mxu0 0
    %673 = vmatprep.subr.bf16.mxu0 0
    %674 = vmatpush2.bf16.msra.mxu0 0
    %675 = vmatprep.subr.bf16.mxu0 0
    %676 = vmatpush2.bf16.msra.mxu0 0
    %677 = vmatprep.mubr.bf16.mxu0 0
    %678 = vmatmul.mubr.bf16.gmra.mxu0 %v396
    %v679 = vpop.f32.mrf.mxu0
    %v680 = vadd.f32 0.0, %v679
    %v681 = vpop.f32.mrf.mxu0
    %v682 = vadd.f32 0.0, %v681
    %v683 = vpop.f32.mrf.mxu0
    %v684 = vadd.f32 0.0, %v683
    %v685 = vpop.f32.mrf.mxu0
    %v686 = vadd.f32 0.0, %v685
    %687 = vmatprep.mubr.bf16.mxu0 0
    %688 = vmatmul.mubr.bf16.gmra.mxu0 %v399
    %v689 = vpop.f32.mrf.mxu0
    %v690 = vadd.f32 0.0, %v689
    %v691 = vpop.f32.mrf.mxu0
    %v692 = vadd.f32 0.0, %v691
    %v693 = vpop.f32.mrf.mxu0
    %v694 = vadd.f32 0.0, %v693
    %v695 = vpop.f32.mrf.mxu0
    %v696 = vadd.f32 0.0, %v695
    %697 = vmatprep.mubr.bf16.mxu0 0
    %698 = vmatmul.mubr.bf16.gmra.mxu0 %v402
    %v699 = vpop.f32.mrf.mxu0
    %v700 = vadd.f32 0.0, %v699
    %v701 = vpop.f32.mrf.mxu0
    %v702 = vadd.f32 0.0, %v701
    %v703 = vpop.f32.mrf.mxu0
    %v704 = vadd.f32 0.0, %v703
    %v705 = vpop.f32.mrf.mxu0
    %v706 = vadd.f32 0.0, %v705
    %707 = vmatprep.mubr.bf16.mxu0 0
    %708 = vmatmul.mubr.bf16.gmra.mxu0 %v405
    %v709 = vpop.f32.mrf.mxu0
    %v710 = vadd.f32 0.0, %v709
    %v711 = vpop.f32.mrf.mxu0
    %v712 = vadd.f32 0.0, %v711
    %v713 = vpop.f32.mrf.mxu0
    %v714 = vadd.f32 0.0, %v713
    %v715 = vpop.f32.mrf.mxu0
    %v716 = vadd.f32 0.0, %v715
    %717 = vmatprep.mubr.bf16.mxu0 0
    %718 = vmatmul.mubr.bf16.gmra.mxu0 %v408
    %v719 = vpop.f32.mrf.mxu0
    %v720 = vadd.f32 0.0, %v719
    %v721 = vpop.f32.mrf.mxu0
    %v722 = vadd.f32 0.0, %v721
    %v723 = vpop.f32.mrf.mxu0
    %v724 = vadd.f32 0.0, %v723
    %v725 = vpop.f32.mrf.mxu0
    %v726 = vadd.f32 0.0, %v725
    %727 = vmatprep.mubr.bf16.mxu0 0
    %728 = vmatmul.mubr.bf16.gmra.mxu0 %v411
    %v729 = vpop.f32.mrf.mxu0
    %v730 = vadd.f32 0.0, %v729
    %v731 = vpop.f32.mrf.mxu0
    %v732 = vadd.f32 0.0, %v731
    %v733 = vpop.f32.mrf.mxu0
    %v734 = vadd.f32 0.0, %v733
    %v735 = vpop.f32.mrf.mxu0
    %v736 = vadd.f32 0.0, %v735
    %737 = vmatprep.mubr.bf16.mxu0 0
    %738 = vmatmul.mubr.bf16.gmra.mxu0 %v414
    %v739 = vpop.f32.mrf.mxu0
    %v740 = vadd.f32 0.0, %v739
    %v741 = vpop.f32.mrf.mxu0
    %v742 = vadd.f32 0.0, %v741
    %v743 = vpop.f32.mrf.mxu0
    %v744 = vadd.f32 0.0, %v743
    %v745 = vpop.f32.mrf.mxu0
    %v746 = vadd.f32 0.0, %v745
    %747 = vmatprep.mubr.bf16.mxu0 0
    %748 = vmatmul.mubr.bf16.gmra.mxu0 %v417
    %v749 = vpop.f32.mrf.mxu0
    %v750 = vadd.f32 0.0, %v749
    %v751 = vpop.f32.mrf.mxu0
    %v752 = vadd.f32 0.0, %v751
    %v753 = vpop.f32.mrf.mxu0
    %v754 = vadd.f32 0.0, %v753
    %v755 = vpop.f32.mrf.mxu0
    %v756 = vadd.f32 0.0, %v755
    %757 = vdwg.mxu0
    %758 = vmatprep.subr.bf16.mxu0 0
    %759 = vmatpush1.bf16.msra.mxu0 0
    %760 = vmatprep.subr.bf16.mxu0 0
    %761 = vmatpush1.bf16.msra.mxu0 0
    %762 = vmatprep.subr.bf16.mxu0 0
    %763 = vmatpush1.bf16.msra.mxu0 0
    %764 = vmatprep.subr.bf16.mxu0 0
    %765 = vmatpush1.bf16.msra.mxu0 0
    %766 = vmatprep.subr.bf16.mxu0 %v341
    %767 = vmatpush1.bf16.msra.mxu0 %v340
    %768 = vmatprep.subr.bf16.mxu0 %v329
    %769 = vmatpush1.bf16.msra.mxu0 %v328
    %770 = vmatprep.subr.bf16.mxu0 %v317
    %771 = vmatpush1.bf16.msra.mxu0 %v316
    %772 = vmatprep.subr.bf16.mxu0 %v305
    %773 = vmatpush1.bf16.msra.mxu0 %v304
    %774 = vmatprep.subr.bf16.mxu0 0
    %775 = vmatpush2.bf16.msra.mxu0 0
    %776 = vmatprep.subr.bf16.mxu0 0
    %777 = vmatpush2.bf16.msra.mxu0 0
    %778 = vmatprep.subr.bf16.mxu0 0
    %779 = vmatpush2.bf16.msra.mxu0 0
    %780 = vmatprep.subr.bf16.mxu0 0
    %781 = vmatpush2.bf16.msra.mxu0 0
    %782 = vmatprep.subr.bf16.mxu0 0
    %783 = vmatpush2.bf16.msra.mxu0 0
    %784 = vmatprep.subr.bf16.mxu0 0
    %785 = vmatpush2.bf16.msra.mxu0 0
    %786 = vmatprep.subr.bf16.mxu0 0
    %787 = vmatpush2.bf16.msra.mxu0 0
    %788 = vmatprep.subr.bf16.mxu0 0
    %789 = vmatpush2.bf16.msra.mxu0 0
    %790 = vmatprep.mubr.bf16.mxu0 0
    %791 = vmatmul.mubr.bf16.gmra.mxu0 %v396
    %v792 = vpop.f32.mrf.mxu0
    %v793 = vadd.f32 0.0, %v792
    %v794 = vpop.f32.mrf.mxu0
    %v795 = vadd.f32 0.0, %v794
    %v796 = vpop.f32.mrf.mxu0
    %v797 = vadd.f32 0.0, %v796
    %v798 = vpop.f32.mrf.mxu0
    %v799 = vadd.f32 0.0, %v798
    %800 = vmatprep.mubr.bf16.mxu0 0
    %801 = vmatmul.mubr.bf16.gmra.mxu0 %v399
    %v802 = vpop.f32.mrf.mxu0
    %v803 = vadd.f32 0.0, %v802
    %v804 = vpop.f32.mrf.mxu0
    %v805 = vadd.f32 0.0, %v804
    %v806 = vpop.f32.mrf.mxu0
    %v807 = vadd.f32 0.0, %v806
    %v808 = vpop.f32.mrf.mxu0
    %v809 = vadd.f32 0.0, %v808
    %810 = vmatprep.mubr.bf16.mxu0 0
    %811 = vmatmul.mubr.bf16.gmra.mxu0 %v402
    %v812 = vpop.f32.mrf.mxu0
    %v813 = vadd.f32 0.0, %v812
    %v814 = vpop.f32.mrf.mxu0
    %v815 = vadd.f32 0.0, %v814
    %v816 = vpop.f32.mrf.mxu0
    %v817 = vadd.f32 0.0, %v816
    %v818 = vpop.f32.mrf.mxu0
    %v819 = vadd.f32 0.0, %v818
    %820 = vmatprep.mubr.bf16.mxu0 0
    %821 = vmatmul.mubr.bf16.gmra.mxu0 %v405
    %v822 = vpop.f32.mrf.mxu0
    %v823 = vadd.f32 0.0, %v822
    %v824 = vpop.f32.mrf.mxu0
    %v825 = vadd.f32 0.0, %v824
    %v826 = vpop.f32.mrf.mxu0
    %v827 = vadd.f32 0.0, %v826
    %v828 = vpop.f32.mrf.mxu0
    %v829 = vadd.f32 0.0, %v828
    %830 = vmatprep.mubr.bf16.mxu0 0
    %831 = vmatmul.mubr.bf16.gmra.mxu0 %v408
    %v832 = vpop.f32.mrf.mxu0
    %v833 = vadd.f32 0.0, %v832
    %v834 = vpop.f32.mrf.mxu0
    %v835 = vadd.f32 0.0, %v834
    %v836 = vpop.f32.mrf.mxu0
    %v837 = vadd.f32 0.0, %v836
    %v838 = vpop.f32.mrf.mxu0
    %v839 = vadd.f32 0.0, %v838
    %840 = vmatprep.mubr.bf16.mxu0 0
    %841 = vmatmul.mubr.bf16.gmra.mxu0 %v411
    %v842 = vpop.f32.mrf.mxu0
    %v843 = vadd.f32 0.0, %v842
    %v844 = vpop.f32.mrf.mxu0
    %v845 = vadd.f32 0.0, %v844
    %v846 = vpop.f32.mrf.mxu0
    %v847 = vadd.f32 0.0, %v846
    %v848 = vpop.f32.mrf.mxu0
    %v849 = vadd.f32 0.0, %v848
    %850 = vmatprep.mubr.bf16.mxu0 0
    %851 = vmatmul.mubr.bf16.gmra.mxu0 %v414
    %v852 = vpop.f32.mrf.mxu0
    %v853 = vadd.f32 0.0, %v852
    %v854 = vpop.f32.mrf.mxu0
    %v855 = vadd.f32 0.0, %v854
    %v856 = vpop.f32.mrf.mxu0
    %v857 = vadd.f32 0.0, %v856
    %v858 = vpop.f32.mrf.mxu0
    %v859 = vadd.f32 0.0, %v858
    %860 = vmatprep.mubr.bf16.mxu0 0
    %861 = vmatmul.mubr.bf16.gmra.mxu0 %v417
    %v862 = vpop.f32.mrf.mxu0
    %v863 = vadd.f32 0.0, %v862
    %v864 = vpop.f32.mrf.mxu0
    %v865 = vadd.f32 0.0, %v864
    %v866 = vpop.f32.mrf.mxu0
    %v867 = vadd.f32 0.0, %v866
    %v868 = vpop.f32.mrf.mxu0
    %v869 = vadd.f32 0.0, %v868
    %870 = vdwg.mxu0
    %871 = vmatprep.subr.bf16.mxu0 0
    %872 = vmatpush1.bf16.msra.mxu0 0
    %873 = vmatprep.subr.bf16.mxu0 0
    %874 = vmatpush1.bf16.msra.mxu0 0
    %875 = vmatprep.subr.bf16.mxu0 0
    %876 = vmatpush1.bf16.msra.mxu0 0
    %877 = vmatprep.subr.bf16.mxu0 0
    %878 = vmatpush1.bf16.msra.mxu0 0
    %879 = vmatprep.subr.bf16.mxu0 %v343
    %880 = vmatpush1.bf16.msra.mxu0 %v342
    %881 = vmatprep.subr.bf16.mxu0 %v331
    %882 = vmatpush1.bf16.msra.mxu0 %v330
    %883 = vmatprep.subr.bf16.mxu0 %v319
    %884 = vmatpush1.bf16.msra.mxu0 %v318
    %885 = vmatprep.subr.bf16.mxu0 %v307
    %886 = vmatpush1.bf16.msra.mxu0 %v306
    %887 = vmatprep.subr.bf16.mxu0 0
    %888 = vmatpush2.bf16.msra.mxu0 0
    %889 = vmatprep.subr.bf16.mxu0 0
    %890 = vmatpush2.bf16.msra.mxu0 0
    %891 = vmatprep.subr.bf16.mxu0 0
    %892 = vmatpush2.bf16.msra.mxu0 0
    %893 = vmatprep.subr.bf16.mxu0 0
    %894 = vmatpush2.bf16.msra.mxu0 0
    %895 = vmatprep.subr.bf16.mxu0 0
    %896 = vmatpush2.bf16.msra.mxu0 0
    %897 = vmatprep.subr.bf16.mxu0 0
    %898 = vmatpush2.bf16.msra.mxu0 0
    %899 = vmatprep.subr.bf16.mxu0 0
    %900 = vmatpush2.bf16.msra.mxu0 0
    %901 = vmatprep.subr.bf16.mxu0 0
    %902 = vmatpush2.bf16.msra.mxu0 0
    %903 = vmatprep.mubr.bf16.mxu0 0
    %904 = vmatmul.mubr.bf16.gmra.mxu0 %v396
    %v905 = vpop.f32.mrf.mxu0
    %v906 = vadd.f32 0.0, %v905
    %v907 = vpop.f32.mrf.mxu0
    %v908 = vadd.f32 0.0, %v907
    %v909 = vpop.f32.mrf.mxu0
    %v910 = vadd.f32 0.0, %v909
    %v911 = vpop.f32.mrf.mxu0
    %v912 = vadd.f32 0.0, %v911
    %913 = vmatprep.mubr.bf16.mxu0 0
    %914 = vmatmul.mubr.bf16.gmra.mxu0 %v399
    %v915 = vpop.f32.mrf.mxu0
    %v916 = vadd.f32 0.0, %v915
    %v917 = vpop.f32.mrf.mxu0
    %v918 = vadd.f32 0.0, %v917
    %v919 = vpop.f32.mrf.mxu0
    %v920 = vadd.f32 0.0, %v919
    %v921 = vpop.f32.mrf.mxu0
    %v922 = vadd.f32 0.0, %v921
    %923 = vmatprep.mubr.bf16.mxu0 0
    %924 = vmatmul.mubr.bf16.gmra.mxu0 %v402
    %v925 = vpop.f32.mrf.mxu0
    %v926 = vadd.f32 0.0, %v925
    %v927 = vpop.f32.mrf.mxu0
    %v928 = vadd.f32 0.0, %v927
    %v929 = vpop.f32.mrf.mxu0
    %v930 = vadd.f32 0.0, %v929
    %v931 = vpop.f32.mrf.mxu0
    %v932 = vadd.f32 0.0, %v931
    %933 = vmatprep.mubr.bf16.mxu0 0
    %934 = vmatmul.mubr.bf16.gmra.mxu0 %v405
    %v935 = vpop.f32.mrf.mxu0
    %v936 = vadd.f32 0.0, %v935
    %v937 = vpop.f32.mrf.mxu0
    %v938 = vadd.f32 0.0, %v937
    %v939 = vpop.f32.mrf.mxu0
    %v940 = vadd.f32 0.0, %v939
    %v941 = vpop.f32.mrf.mxu0
    %v942 = vadd.f32 0.0, %v941
    %943 = vmatprep.mubr.bf16.mxu0 0
    %944 = vmatmul.mubr.bf16.gmra.mxu0 %v408
    %v945 = vpop.f32.mrf.mxu0
    %v946 = vadd.f32 0.0, %v945
    %v947 = vpop.f32.mrf.mxu0
    %v948 = vadd.f32 0.0, %v947
    %v949 = vpop.f32.mrf.mxu0
    %v950 = vadd.f32 0.0, %v949
    %v951 = vpop.f32.mrf.mxu0
    %v952 = vadd.f32 0.0, %v951
    %953 = vmatprep.mubr.bf16.mxu0 0
    %954 = vmatmul.mubr.bf16.gmra.mxu0 %v411
    %v955 = vpop.f32.mrf.mxu0
    %v956 = vadd.f32 0.0, %v955
    %v957 = vpop.f32.mrf.mxu0
    %v958 = vadd.f32 0.0, %v957
    %v959 = vpop.f32.mrf.mxu0
    %v960 = vadd.f32 0.0, %v959
    %v961 = vpop.f32.mrf.mxu0
    %v962 = vadd.f32 0.0, %v961
    %963 = vmatprep.mubr.bf16.mxu0 0
    %964 = vmatmul.mubr.bf16.gmra.mxu0 %v414
    %v965 = vpop.f32.mrf.mxu0
    %v966 = vadd.f32 0.0, %v965
    %v967 = vpop.f32.mrf.mxu0
    %v968 = vadd.f32 0.0, %v967
    %v969 = vpop.f32.mrf.mxu0
    %v970 = vadd.f32 0.0, %v969
    %v971 = vpop.f32.mrf.mxu0
    %v972 = vadd.f32 0.0, %v971
    %973 = vmatprep.mubr.bf16.mxu0 0
    %974 = vmatmul.mubr.bf16.gmra.mxu0 %v417
    %v975 = vpop.f32.mrf.mxu0
    %v976 = vadd.f32 0.0, %v975
    %v977 = vpop.f32.mrf.mxu0
    %v978 = vadd.f32 0.0, %v977
    %v979 = vpop.f32.mrf.mxu0
    %v980 = vadd.f32 0.0, %v979
    %v981 = vpop.f32.mrf.mxu0
    %v982 = vadd.f32 0.0, %v981
    %983 = vdwg.mxu0
    %984 = vmatprep.subr.bf16.mxu0 0
    %985 = vmatpush1.bf16.msra.mxu0 0
    %986 = vmatprep.subr.bf16.mxu0 0
    %987 = vmatpush1.bf16.msra.mxu0 0
    %988 = vmatprep.subr.bf16.mxu0 0
    %989 = vmatpush1.bf16.msra.mxu0 0
    %990 = vmatprep.subr.bf16.mxu0 0
    %991 = vmatpush1.bf16.msra.mxu0 0
    %992 = vmatprep.subr.bf16.mxu0 %v345
    %993 = vmatpush1.bf16.msra.mxu0 %v344
    %994 = vmatprep.subr.bf16.mxu0 %v333
    %995 = vmatpush1.bf16.msra.mxu0 %v332
    %996 = vmatprep.subr.bf16.mxu0 %v321
    %997 = vmatpush1.bf16.msra.mxu0 %v320
    %998 = vmatprep.subr.bf16.mxu0 %v309
    %999 = vmatpush1.bf16.msra.mxu0 %v308
    %1000 = vmatprep.subr.bf16.mxu0 0
    %1001 = vmatpush2.bf16.msra.mxu0 0
    %1002 = vmatprep.subr.bf16.mxu0 0
    %1003 = vmatpush2.bf16.msra.mxu0 0
    %1004 = vmatprep.subr.bf16.mxu0 0
    %1005 = vmatpush2.bf16.msra.mxu0 0
    %1006 = vmatprep.subr.bf16.mxu0 0
    %1007 = vmatpush2.bf16.msra.mxu0 0
    %1008 = vmatprep.subr.bf16.mxu0 0
    %1009 = vmatpush2.bf16.msra.mxu0 0
    %1010 = vmatprep.subr.bf16.mxu0 0
    %1011 = vmatpush2.bf16.msra.mxu0 0
    %1012 = vmatprep.subr.bf16.mxu0 0
    %1013 = vmatpush2.bf16.msra.mxu0 0
    %1014 = vmatprep.subr.bf16.mxu0 0
    %1015 = vmatpush2.bf16.msra.mxu0 0
    %1016 = vmatprep.mubr.bf16.mxu0 0
    %1017 = vmatmul.mubr.bf16.gmra.mxu0 %v396
    %v1018 = vpop.f32.mrf.mxu0
    %v1019 = vadd.f32 0.0, %v1018
    %v1020 = vpop.f32.mrf.mxu0
    %v1021 = vadd.f32 0.0, %v1020
    %v1022 = vpop.f32.mrf.mxu0
    %v1023 = vadd.f32 0.0, %v1022
    %v1024 = vpop.f32.mrf.mxu0
    %v1025 = vadd.f32 0.0, %v1024
    %1026 = vmatprep.mubr.bf16.mxu0 0
    %1027 = vmatmul.mubr.bf16.gmra.mxu0 %v399
    %v1028 = vpop.f32.mrf.mxu0
    %v1029 = vadd.f32 0.0, %v1028
    %v1030 = vpop.f32.mrf.mxu0
    %v1031 = vadd.f32 0.0, %v1030
    %v1032 = vpop.f32.mrf.mxu0
    %v1033 = vadd.f32 0.0, %v1032
    %v1034 = vpop.f32.mrf.mxu0
    %v1035 = vadd.f32 0.0, %v1034
    %1036 = vmatprep.mubr.bf16.mxu0 0
    %1037 = vmatmul.mubr.bf16.gmra.mxu0 %v402
    %v1038 = vpop.f32.mrf.mxu0
    %v1039 = vadd.f32 0.0, %v1038
    %v1040 = vpop.f32.mrf.mxu0
    %v1041 = vadd.f32 0.0, %v1040
    %v1042 = vpop.f32.mrf.mxu0
    %v1043 = vadd.f32 0.0, %v1042
    %v1044 = vpop.f32.mrf.mxu0
    %v1045 = vadd.f32 0.0, %v1044
    %1046 = vmatprep.mubr.bf16.mxu0 0
    %1047 = vmatmul.mubr.bf16.gmra.mxu0 %v405
    %v1048 = vpop.f32.mrf.mxu0
    %v1049 = vadd.f32 0.0, %v1048
    %v1050 = vpop.f32.mrf.mxu0
    %v1051 = vadd.f32 0.0, %v1050
    %v1052 = vpop.f32.mrf.mxu0
    %v1053 = vadd.f32 0.0, %v1052
    %v1054 = vpop.f32.mrf.mxu0
    %v1055 = vadd.f32 0.0, %v1054
    %1056 = vmatprep.mubr.bf16.mxu0 0
    %1057 = vmatmul.mubr.bf16.gmra.mxu0 %v408
    %v1058 = vpop.f32.mrf.mxu0
    %v1059 = vadd.f32 0.0, %v1058
    %v1060 = vpop.f32.mrf.mxu0
    %v1061 = vadd.f32 0.0, %v1060
    %v1062 = vpop.f32.mrf.mxu0
    %v1063 = vadd.f32 0.0, %v1062
    %v1064 = vpop.f32.mrf.mxu0
    %v1065 = vadd.f32 0.0, %v1064
    %1066 = vmatprep.mubr.bf16.mxu0 0
    %1067 = vmatmul.mubr.bf16.gmra.mxu0 %v411
    %v1068 = vpop.f32.mrf.mxu0
    %v1069 = vadd.f32 0.0, %v1068
    %v1070 = vpop.f32.mrf.mxu0
    %v1071 = vadd.f32 0.0, %v1070
    %v1072 = vpop.f32.mrf.mxu0
    %v1073 = vadd.f32 0.0, %v1072
    %v1074 = vpop.f32.mrf.mxu0
    %v1075 = vadd.f32 0.0, %v1074
    %1076 = vmatprep.mubr.bf16.mxu0 0
    %1077 = vmatmul.mubr.bf16.gmra.mxu0 %v414
    %v1078 = vpop.f32.mrf.mxu0
    %v1079 = vadd.f32 0.0, %v1078
    %v1080 = vpop.f32.mrf.mxu0
    %v1081 = vadd.f32 0.0, %v1080
    %v1082 = vpop.f32.mrf.mxu0
    %v1083 = vadd.f32 0.0, %v1082
    %v1084 = vpop.f32.mrf.mxu0
    %v1085 = vadd.f32 0.0, %v1084
    %1086 = vmatprep.mubr.bf16.mxu0 0
    %1087 = vmatmul.mubr.bf16.gmra.mxu0 %v417
    %v1088 = vpop.f32.mrf.mxu0
    %v1089 = vadd.f32 0.0, %v1088
    %v1090 = vpop.f32.mrf.mxu0
    %v1091 = vadd.f32 0.0, %v1090
    %v1092 = vpop.f32.mrf.mxu0
    %v1093 = vadd.f32 0.0, %v1092
    %v1094 = vpop.f32.mrf.mxu0
    %v1095 = vadd.f32 0.0, %v1094
    %1096 = vdwg.mxu0
    %vm1113 = vcmask 1046528
    %v1114 = vrot.slane %v456, 1
    %v1115 = vrot.slane %v460, 1
    %v1116 = vsel %vm1113, %v1114, %v1115
    %v1117 = vrot.slane %v466, 1
    %v1118 = vrot.slane %v470, 1
    %v1119 = vsel %vm1113, %v1117, %v1118
    %v1120 = vrot.slane %v476, 1
    %v1121 = vrot.slane %v480, 1
    %v1122 = vsel %vm1113, %v1120, %v1121
    %v1123 = vrot.slane %v486, 1
    %v1124 = vrot.slane %v490, 1
    %v1125 = vsel %vm1113, %v1123, %v1124
    %v1126 = vrot.slane %v496, 1
    %v1127 = vrot.slane %v500, 1
    %v1128 = vsel %vm1113, %v1126, %v1127
    %v1129 = vrot.slane %v506, 1
    %v1130 = vrot.slane %v510, 1
    %v1131 = vsel %vm1113, %v1129, %v1130
    %v1132 = vrot.slane %v516, 1
    %v1133 = vrot.slane %v520, 1
    %v1134 = vsel %vm1113, %v1132, %v1133
    %v1135 = vrot.slane %v526, 1
    %v1136 = vrot.slane %v530, 1
    %v1137 = vsel %vm1113, %v1135, %v1136
    %v1154 = vadd.f32 %v454, %v1116
    %v1155 = vadd.f32 %v458, %v1115
    %v1156 = vadd.f32 %v464, %v1119
    %v1157 = vadd.f32 %v468, %v1118
    %v1158 = vadd.f32 %v474, %v1122
    %v1159 = vadd.f32 %v478, %v1121
    %v1160 = vadd.f32 %v484, %v1125
    %v1161 = vadd.f32 %v488, %v1124
    %v1162 = vadd.f32 %v494, %v1128
    %v1163 = vadd.f32 %v498, %v1127
    %v1164 = vadd.f32 %v504, %v1131
    %v1165 = vadd.f32 %v508, %v1130
    %v1166 = vadd.f32 %v514, %v1134
    %v1167 = vadd.f32 %v518, %v1133
    %v1168 = vadd.f32 %v524, %v1137
    %v1169 = vadd.f32 %v528, %v1136
    %vm1186 = vcmask 1045504
    %v1187 = vrot.slane %v567, 2
    %v1188 = vrot.slane %v571, 2
    %v1189 = vsel %vm1186, %v1187, %v1188
    %v1190 = vrot.slane %v577, 2
    %v1191 = vrot.slane %v581, 2
    %v1192 = vsel %vm1186, %v1190, %v1191
    %v1193 = vrot.slane %v587, 2
    %v1194 = vrot.slane %v591, 2
    %v1195 = vsel %vm1186, %v1193, %v1194
    %v1196 = vrot.slane %v597, 2
    %v1197 = vrot.slane %v601, 2
    %v1198 = vsel %vm1186, %v1196, %v1197
    %v1199 = vrot.slane %v607, 2
    %v1200 = vrot.slane %v611, 2
    %v1201 = vsel %vm1186, %v1199, %v1200
    %v1202 = vrot.slane %v617, 2
    %v1203 = vrot.slane %v621, 2
    %v1204 = vsel %vm1186, %v1202, %v1203
    %v1205 = vrot.slane %v627, 2
    %v1206 = vrot.slane %v631, 2
    %v1207 = vsel %vm1186, %v1205, %v1206
    %v1208 = vrot.slane %v637, 2
    %v1209 = vrot.slane %v641, 2
    %v1210 = vsel %vm1186, %v1208, %v1209
    %v1227 = vadd.f32 %v1154, %v1189
    %v1228 = vadd.f32 %v1155, %v1188
    %v1229 = vadd.f32 %v1156, %v1192
    %v1230 = vadd.f32 %v1157, %v1191
    %v1231 = vadd.f32 %v1158, %v1195
    %v1232 = vadd.f32 %v1159, %v1194
    %v1233 = vadd.f32 %v1160, %v1198
    %v1234 = vadd.f32 %v1161, %v1197
    %v1235 = vadd.f32 %v1162, %v1201
    %v1236 = vadd.f32 %v1163, %v1200
    %v1237 = vadd.f32 %v1164, %v1204
    %v1238 = vadd.f32 %v1165, %v1203
    %v1239 = vadd.f32 %v1166, %v1207
    %v1240 = vadd.f32 %v1167, %v1206
    %v1241 = vadd.f32 %v1168, %v1210
    %v1242 = vadd.f32 %v1169, %v1209
    %vm1243 = vcmask 1047554
    %v1244 = vsel %vm1243, %v1227, -inf
    %vm1245 = vcmask 1043456
    %v1246 = vsel %vm1245, %v1228, -inf
    %v1247 = vmax.f32 %v1244, %v1246
    %v1248 = vrot.slane %v1247, 4
    %v1249 = vmax.f32 %v1247, %v1248
    %v1250 = vrot.slane %v1249, 2
    %v1251 = vmax.f32 %v1249, %v1250
    %v1252 = vrot.slane %v1251, 1
    %v1253 = vmax.f32 %v1251, %v1252
    %v1254 = vsel %vm1243, %v1229, -inf
    %v1255 = vsel %vm1245, %v1230, -inf
    %v1256 = vmax.f32 %v1254, %v1255
    %v1257 = vrot.slane %v1256, 4
    %v1258 = vmax.f32 %v1256, %v1257
    %v1259 = vrot.slane %v1258, 2
    %v1260 = vmax.f32 %v1258, %v1259
    %v1261 = vrot.slane %v1260, 1
    %v1262 = vmax.f32 %v1260, %v1261
    %v1263 = vsel %vm1243, %v1231, -inf
    %v1264 = vsel %vm1245, %v1232, -inf
    %v1265 = vmax.f32 %v1263, %v1264
    %v1266 = vrot.slane %v1265, 4
    %v1267 = vmax.f32 %v1265, %v1266
    %v1268 = vrot.slane %v1267, 2
    %v1269 = vmax.f32 %v1267, %v1268
    %v1270 = vrot.slane %v1269, 1
    %v1271 = vmax.f32 %v1269, %v1270
    %v1272 = vsel %vm1243, %v1233, -inf
    %v1273 = vsel %vm1245, %v1234, -inf
    %v1274 = vmax.f32 %v1272, %v1273
    %v1275 = vrot.slane %v1274, 4
    %v1276 = vmax.f32 %v1274, %v1275
    %v1277 = vrot.slane %v1276, 2
    %v1278 = vmax.f32 %v1276, %v1277
    %v1279 = vrot.slane %v1278, 1
    %v1280 = vmax.f32 %v1278, %v1279
    %v1281 = vsel %vm1243, %v1235, -inf
    %v1282 = vsel %vm1245, %v1236, -inf
    %v1283 = vmax.f32 %v1281, %v1282
    %v1284 = vrot.slane %v1283, 4
    %v1285 = vmax.f32 %v1283, %v1284
    %v1286 = vrot.slane %v1285, 2
    %v1287 = vmax.f32 %v1285, %v1286
    %v1288 = vrot.slane %v1287, 1
    %v1289 = vmax.f32 %v1287, %v1288
    %v1290 = vsel %vm1243, %v1237, -inf
    %v1291 = vsel %vm1245, %v1238, -inf
    %v1292 = vmax.f32 %v1290, %v1291
    %v1293 = vrot.slane %v1292, 4
    %v1294 = vmax.f32 %v1292, %v1293
    %v1295 = vrot.slane %v1294, 2
    %v1296 = vmax.f32 %v1294, %v1295
    %v1297 = vrot.slane %v1296, 1
    %v1298 = vmax.f32 %v1296, %v1297
    %v1299 = vsel %vm1243, %v1239, -inf
    %v1300 = vsel %vm1245, %v1240, -inf
    %v1301 = vmax.f32 %v1299, %v1300
    %v1302 = vrot.slane %v1301, 4
    %v1303 = vmax.f32 %v1301, %v1302
    %v1304 = vrot.slane %v1303, 2
    %v1305 = vmax.f32 %v1303, %v1304
    %v1306 = vrot.slane %v1305, 1
    %v1307 = vmax.f32 %v1305, %v1306
    %v1308 = vsel %vm1243, %v1241, -inf
    %v1309 = vsel %vm1245, %v1242, -inf
    %v1310 = vmax.f32 %v1308, %v1309
    %v1311 = vrot.slane %v1310, 4
    %v1312 = vmax.f32 %v1310, %v1311
    %v1313 = vrot.slane %v1312, 2
    %v1314 = vmax.f32 %v1312, %v1313
    %v1315 = vrot.slane %v1314, 1
    %v1316 = vmax.f32 %v1314, %v1315
    %v1333 = vrot.slane %v680, 1
    %v1334 = vrot.slane %v684, 1
    %v1335 = vsel %vm1113, %v1333, %v1334
    %v1336 = vrot.slane %v690, 1
    %v1337 = vrot.slane %v694, 1
    %v1338 = vsel %vm1113, %v1336, %v1337
    %v1339 = vrot.slane %v700, 1
    %v1340 = vrot.slane %v704, 1
    %v1341 = vsel %vm1113, %v1339, %v1340
    %v1342 = vrot.slane %v710, 1
    %v1343 = vrot.slane %v714, 1
    %v1344 = vsel %vm1113, %v1342, %v1343
    %v1345 = vrot.slane %v720, 1
    %v1346 = vrot.slane %v724, 1
    %v1347 = vsel %vm1113, %v1345, %v1346
    %v1348 = vrot.slane %v730, 1
    %v1349 = vrot.slane %v734, 1
    %v1350 = vsel %vm1113, %v1348, %v1349
    %v1351 = vrot.slane %v740, 1
    %v1352 = vrot.slane %v744, 1
    %v1353 = vsel %vm1113, %v1351, %v1352
    %v1354 = vrot.slane %v750, 1
    %v1355 = vrot.slane %v754, 1
    %v1356 = vsel %vm1113, %v1354, %v1355
    %v1373 = vadd.f32 %v569, %v1335
    %v1374 = vadd.f32 %v573, %v1334
    %v1375 = vadd.f32 %v579, %v1338
    %v1376 = vadd.f32 %v583, %v1337
    %v1377 = vadd.f32 %v589, %v1341
    %v1378 = vadd.f32 %v593, %v1340
    %v1379 = vadd.f32 %v599, %v1344
    %v1380 = vadd.f32 %v603, %v1343
    %v1381 = vadd.f32 %v609, %v1347
    %v1382 = vadd.f32 %v613, %v1346
    %v1383 = vadd.f32 %v619, %v1350
    %v1384 = vadd.f32 %v623, %v1349
    %v1385 = vadd.f32 %v629, %v1353
    %v1386 = vadd.f32 %v633, %v1352
    %v1387 = vadd.f32 %v639, %v1356
    %v1388 = vadd.f32 %v643, %v1355
    %v1405 = vrot.slane %v682, 2
    %v1406 = vrot.slane %v686, 2
    %v1407 = vsel %vm1186, %v1405, %v1406
    %v1408 = vrot.slane %v692, 2
    %v1409 = vrot.slane %v696, 2
    %v1410 = vsel %vm1186, %v1408, %v1409
    %v1411 = vrot.slane %v702, 2
    %v1412 = vrot.slane %v706, 2
    %v1413 = vsel %vm1186, %v1411, %v1412
    %v1414 = vrot.slane %v712, 2
    %v1415 = vrot.slane %v716, 2
    %v1416 = vsel %vm1186, %v1414, %v1415
    %v1417 = vrot.slane %v722, 2
    %v1418 = vrot.slane %v726, 2
    %v1419 = vsel %vm1186, %v1417, %v1418
    %v1420 = vrot.slane %v732, 2
    %v1421 = vrot.slane %v736, 2
    %v1422 = vsel %vm1186, %v1420, %v1421
    %v1423 = vrot.slane %v742, 2
    %v1424 = vrot.slane %v746, 2
    %v1425 = vsel %vm1186, %v1423, %v1424
    %v1426 = vrot.slane %v752, 2
    %v1427 = vrot.slane %v756, 2
    %v1428 = vsel %vm1186, %v1426, %v1427
    %v1445 = vadd.f32 %v1373, %v1407
    %v1446 = vadd.f32 %v1374, %v1406
    %v1447 = vadd.f32 %v1375, %v1410
    %v1448 = vadd.f32 %v1376, %v1409
    %v1449 = vadd.f32 %v1377, %v1413
    %v1450 = vadd.f32 %v1378, %v1412
    %v1451 = vadd.f32 %v1379, %v1416
    %v1452 = vadd.f32 %v1380, %v1415
    %v1453 = vadd.f32 %v1381, %v1419
    %v1454 = vadd.f32 %v1382, %v1418
    %v1455 = vadd.f32 %v1383, %v1422
    %v1456 = vadd.f32 %v1384, %v1421
    %v1457 = vadd.f32 %v1385, %v1425
    %v1458 = vadd.f32 %v1386, %v1424
    %v1459 = vadd.f32 %v1387, %v1428
    %v1460 = vadd.f32 %v1388, %v1427
    %vm1477 = vcmask 1044480
    %v1478 = vrot.slane %v793, 3
    %v1479 = vrot.slane %v797, 3
    %v1480 = vsel %vm1477, %v1478, %v1479
    %v1481 = vrot.slane %v803, 3
    %v1482 = vrot.slane %v807, 3
    %v1483 = vsel %vm1477, %v1481, %v1482
    %v1484 = vrot.slane %v813, 3
    %v1485 = vrot.slane %v817, 3
    %v1486 = vsel %vm1477, %v1484, %v1485
    %v1487 = vrot.slane %v823, 3
    %v1488 = vrot.slane %v827, 3
    %v1489 = vsel %vm1477, %v1487, %v1488
    %v1490 = vrot.slane %v833, 3
    %v1491 = vrot.slane %v837, 3
    %v1492 = vsel %vm1477, %v1490, %v1491
    %v1493 = vrot.slane %v843, 3
    %v1494 = vrot.slane %v847, 3
    %v1495 = vsel %vm1477, %v1493, %v1494
    %v1496 = vrot.slane %v853, 3
    %v1497 = vrot.slane %v857, 3
    %v1498 = vsel %vm1477, %v1496, %v1497
    %v1499 = vrot.slane %v863, 3
    %v1500 = vrot.slane %v867, 3
    %v1501 = vsel %vm1477, %v1499, %v1500
    %v1518 = vadd.f32 %v1445, %v1480
    %v1519 = vadd.f32 %v1446, %v1479
    %v1520 = vadd.f32 %v1447, %v1483
    %v1521 = vadd.f32 %v1448, %v1482
    %v1522 = vadd.f32 %v1449, %v1486
    %v1523 = vadd.f32 %v1450, %v1485
    %v1524 = vadd.f32 %v1451, %v1489
    %v1525 = vadd.f32 %v1452, %v1488
    %v1526 = vadd.f32 %v1453, %v1492
    %v1527 = vadd.f32 %v1454, %v1491
    %v1528 = vadd.f32 %v1455, %v1495
    %v1529 = vadd.f32 %v1456, %v1494
    %v1530 = vadd.f32 %v1457, %v1498
    %v1531 = vadd.f32 %v1458, %v1497
    %v1532 = vadd.f32 %v1459, %v1501
    %v1533 = vadd.f32 %v1460, %v1500
    %vm1534 = vcmask 1047553
    %v1535 = vsel %vm1534, %v1518, -inf
    %v1536 = vsel %vm1245, %v1519, -inf
    %v1537 = vmax.f32 %v1535, %v1536
    %v1538 = vrot.slane %v1537, 4
    %v1539 = vmax.f32 %v1537, %v1538
    %v1540 = vrot.slane %v1539, 2
    %v1541 = vmax.f32 %v1539, %v1540
    %v1542 = vrot.slane %v1541, 1
    %v1543 = vmax.f32 %v1541, %v1542
    %v1544 = vsel %vm1534, %v1520, -inf
    %v1545 = vsel %vm1245, %v1521, -inf
    %v1546 = vmax.f32 %v1544, %v1545
    %v1547 = vrot.slane %v1546, 4
    %v1548 = vmax.f32 %v1546, %v1547
    %v1549 = vrot.slane %v1548, 2
    %v1550 = vmax.f32 %v1548, %v1549
    %v1551 = vrot.slane %v1550, 1
    %v1552 = vmax.f32 %v1550, %v1551
    %v1553 = vsel %vm1534, %v1522, -inf
    %v1554 = vsel %vm1245, %v1523, -inf
    %v1555 = vmax.f32 %v1553, %v1554
    %v1556 = vrot.slane %v1555, 4
    %v1557 = vmax.f32 %v1555, %v1556
    %v1558 = vrot.slane %v1557, 2
    %v1559 = vmax.f32 %v1557, %v1558
    %v1560 = vrot.slane %v1559, 1
    %v1561 = vmax.f32 %v1559, %v1560
    %v1562 = vsel %vm1534, %v1524, -inf
    %v1563 = vsel %vm1245, %v1525, -inf
    %v1564 = vmax.f32 %v1562, %v1563
    %v1565 = vrot.slane %v1564, 4
    %v1566 = vmax.f32 %v1564, %v1565
    %v1567 = vrot.slane %v1566, 2
    %v1568 = vmax.f32 %v1566, %v1567
    %v1569 = vrot.slane %v1568, 1
    %v1570 = vmax.f32 %v1568, %v1569
    %v1571 = vsel %vm1534, %v1526, -inf
    %v1572 = vsel %vm1245, %v1527, -inf
    %v1573 = vmax.f32 %v1571, %v1572
    %v1574 = vrot.slane %v1573, 4
    %v1575 = vmax.f32 %v1573, %v1574
    %v1576 = vrot.slane %v1575, 2
    %v1577 = vmax.f32 %v1575, %v1576
    %v1578 = vrot.slane %v1577, 1
    %v1579 = vmax.f32 %v1577, %v1578
    %v1580 = vsel %vm1534, %v1528, -inf
    %v1581 = vsel %vm1245, %v1529, -inf
    %v1582 = vmax.f32 %v1580, %v1581
    %v1583 = vrot.slane %v1582, 4
    %v1584 = vmax.f32 %v1582, %v1583
    %v1585 = vrot.slane %v1584, 2
    %v1586 = vmax.f32 %v1584, %v1585
    %v1587 = vrot.slane %v1586, 1
    %v1588 = vmax.f32 %v1586, %v1587
    %v1589 = vsel %vm1534, %v1530, -inf
    %v1590 = vsel %vm1245, %v1531, -inf
    %v1591 = vmax.f32 %v1589, %v1590
    %v1592 = vrot.slane %v1591, 4
    %v1593 = vmax.f32 %v1591, %v1592
    %v1594 = vrot.slane %v1593, 2
    %v1595 = vmax.f32 %v1593, %v1594
    %v1596 = vrot.slane %v1595, 1
    %v1597 = vmax.f32 %v1595, %v1596
    %v1598 = vsel %vm1534, %v1532, -inf
    %v1599 = vsel %vm1245, %v1533, -inf
    %v1600 = vmax.f32 %v1598, %v1599
    %v1601 = vrot.slane %v1600, 4
    %v1602 = vmax.f32 %v1600, %v1601
    %v1603 = vrot.slane %v1602, 2
    %v1604 = vmax.f32 %v1602, %v1603
    %v1605 = vrot.slane %v1604, 1
    %v1606 = vmax.f32 %v1604, %v1605
    %v1623 = vrot.slane %v906, 1
    %v1624 = vrot.slane %v910, 1
    %v1625 = vsel %vm1113, %v1623, %v1624
    %v1626 = vrot.slane %v916, 1
    %v1627 = vrot.slane %v920, 1
    %v1628 = vsel %vm1113, %v1626, %v1627
    %v1629 = vrot.slane %v926, 1
    %v1630 = vrot.slane %v930, 1
    %v1631 = vsel %vm1113, %v1629, %v1630
    %v1632 = vrot.slane %v936, 1
    %v1633 = vrot.slane %v940, 1
    %v1634 = vsel %vm1113, %v1632, %v1633
    %v1635 = vrot.slane %v946, 1
    %v1636 = vrot.slane %v950, 1
    %v1637 = vsel %vm1113, %v1635, %v1636
    %v1638 = vrot.slane %v956, 1
    %v1639 = vrot.slane %v960, 1
    %v1640 = vsel %vm1113, %v1638, %v1639
    %v1641 = vrot.slane %v966, 1
    %v1642 = vrot.slane %v970, 1
    %v1643 = vsel %vm1113, %v1641, %v1642
    %v1644 = vrot.slane %v976, 1
    %v1645 = vrot.slane %v980, 1
    %v1646 = vsel %vm1113, %v1644, %v1645
    %v1663 = vadd.f32 %v795, %v1625
    %v1664 = vadd.f32 %v799, %v1624
    %v1665 = vadd.f32 %v805, %v1628
    %v1666 = vadd.f32 %v809, %v1627
    %v1667 = vadd.f32 %v815, %v1631
    %v1668 = vadd.f32 %v819, %v1630
    %v1669 = vadd.f32 %v825, %v1634
    %v1670 = vadd.f32 %v829, %v1633
    %v1671 = vadd.f32 %v835, %v1637
    %v1672 = vadd.f32 %v839, %v1636
    %v1673 = vadd.f32 %v845, %v1640
    %v1674 = vadd.f32 %v849, %v1639
    %v1675 = vadd.f32 %v855, %v1643
    %v1676 = vadd.f32 %v859, %v1642
    %v1677 = vadd.f32 %v865, %v1646
    %v1678 = vadd.f32 %v869, %v1645
    %v1695 = vrot.slane %v908, 2
    %v1696 = vrot.slane %v912, 2
    %v1697 = vsel %vm1186, %v1695, %v1696
    %v1698 = vrot.slane %v918, 2
    %v1699 = vrot.slane %v922, 2
    %v1700 = vsel %vm1186, %v1698, %v1699
    %v1701 = vrot.slane %v928, 2
    %v1702 = vrot.slane %v932, 2
    %v1703 = vsel %vm1186, %v1701, %v1702
    %v1704 = vrot.slane %v938, 2
    %v1705 = vrot.slane %v942, 2
    %v1706 = vsel %vm1186, %v1704, %v1705
    %v1707 = vrot.slane %v948, 2
    %v1708 = vrot.slane %v952, 2
    %v1709 = vsel %vm1186, %v1707, %v1708
    %v1710 = vrot.slane %v958, 2
    %v1711 = vrot.slane %v962, 2
    %v1712 = vsel %vm1186, %v1710, %v1711
    %v1713 = vrot.slane %v968, 2
    %v1714 = vrot.slane %v972, 2
    %v1715 = vsel %vm1186, %v1713, %v1714
    %v1716 = vrot.slane %v978, 2
    %v1717 = vrot.slane %v982, 2
    %v1718 = vsel %vm1186, %v1716, %v1717
    %v1735 = vadd.f32 %v1663, %v1697
    %v1736 = vadd.f32 %v1664, %v1696
    %v1737 = vadd.f32 %v1665, %v1700
    %v1738 = vadd.f32 %v1666, %v1699
    %v1739 = vadd.f32 %v1667, %v1703
    %v1740 = vadd.f32 %v1668, %v1702
    %v1741 = vadd.f32 %v1669, %v1706
    %v1742 = vadd.f32 %v1670, %v1705
    %v1743 = vadd.f32 %v1671, %v1709
    %v1744 = vadd.f32 %v1672, %v1708
    %v1745 = vadd.f32 %v1673, %v1712
    %v1746 = vadd.f32 %v1674, %v1711
    %v1747 = vadd.f32 %v1675, %v1715
    %v1748 = vadd.f32 %v1676, %v1714
    %v1749 = vadd.f32 %v1677, %v1718
    %v1750 = vadd.f32 %v1678, %v1717
    %v1767 = vrot.slane %v1019, 3
    %v1768 = vrot.slane %v1023, 3
    %v1769 = vsel %vm1477, %v1767, %v1768
    %v1770 = vrot.slane %v1029, 3
    %v1771 = vrot.slane %v1033, 3
    %v1772 = vsel %vm1477, %v1770, %v1771
    %v1773 = vrot.slane %v1039, 3
    %v1774 = vrot.slane %v1043, 3
    %v1775 = vsel %vm1477, %v1773, %v1774
    %v1776 = vrot.slane %v1049, 3
    %v1777 = vrot.slane %v1053, 3
    %v1778 = vsel %vm1477, %v1776, %v1777
    %v1779 = vrot.slane %v1059, 3
    %v1780 = vrot.slane %v1063, 3
    %v1781 = vsel %vm1477, %v1779, %v1780
    %v1782 = vrot.slane %v1069, 3
    %v1783 = vrot.slane %v1073, 3
    %v1784 = vsel %vm1477, %v1782, %v1783
    %v1785 = vrot.slane %v1079, 3
    %v1786 = vrot.slane %v1083, 3
    %v1787 = vsel %vm1477, %v1785, %v1786
    %v1788 = vrot.slane %v1089, 3
    %v1789 = vrot.slane %v1093, 3
    %v1790 = vsel %vm1477, %v1788, %v1789
    %v1807 = vadd.f32 %v1735, %v1769
    %v1808 = vadd.f32 %v1736, %v1768
    %v1809 = vadd.f32 %v1737, %v1772
    %v1810 = vadd.f32 %v1738, %v1771
    %v1811 = vadd.f32 %v1739, %v1775
    %v1812 = vadd.f32 %v1740, %v1774
    %v1813 = vadd.f32 %v1741, %v1778
    %v1814 = vadd.f32 %v1742, %v1777
    %v1815 = vadd.f32 %v1743, %v1781
    %v1816 = vadd.f32 %v1744, %v1780
    %v1817 = vadd.f32 %v1745, %v1784
    %v1818 = vadd.f32 %v1746, %v1783
    %v1819 = vadd.f32 %v1747, %v1787
    %v1820 = vadd.f32 %v1748, %v1786
    %v1821 = vadd.f32 %v1749, %v1790
    %v1822 = vadd.f32 %v1750, %v1789
    %v1839 = vrot.slane %v1021, 4
    %v1840 = vrot.slane %v1025, 4
    %v1841 = vsel %vm1245, %v1839, %v1840
    %v1842 = vrot.slane %v1031, 4
    %v1843 = vrot.slane %v1035, 4
    %v1844 = vsel %vm1245, %v1842, %v1843
    %v1845 = vrot.slane %v1041, 4
    %v1846 = vrot.slane %v1045, 4
    %v1847 = vsel %vm1245, %v1845, %v1846
    %v1848 = vrot.slane %v1051, 4
    %v1849 = vrot.slane %v1055, 4
    %v1850 = vsel %vm1245, %v1848, %v1849
    %v1851 = vrot.slane %v1061, 4
    %v1852 = vrot.slane %v1065, 4
    %v1853 = vsel %vm1245, %v1851, %v1852
    %v1854 = vrot.slane %v1071, 4
    %v1855 = vrot.slane %v1075, 4
    %v1856 = vsel %vm1245, %v1854, %v1855
    %v1857 = vrot.slane %v1081, 4
    %v1858 = vrot.slane %v1085, 4
    %v1859 = vsel %vm1245, %v1857, %v1858
    %v1860 = vrot.slane %v1091, 4
    %v1861 = vrot.slane %v1095, 4
    %v1862 = vsel %vm1245, %v1860, %v1861
    %v1879 = vadd.f32 %v1807, %v1841
    %v1880 = vadd.f32 %v1808, %v1840
    %v1881 = vadd.f32 %v1809, %v1844
    %v1882 = vadd.f32 %v1810, %v1843
    %v1883 = vadd.f32 %v1811, %v1847
    %v1884 = vadd.f32 %v1812, %v1846
    %v1885 = vadd.f32 %v1813, %v1850
    %v1886 = vadd.f32 %v1814, %v1849
    %v1887 = vadd.f32 %v1815, %v1853
    %v1888 = vadd.f32 %v1816, %v1852
    %v1889 = vadd.f32 %v1817, %v1856
    %v1890 = vadd.f32 %v1818, %v1855
    %v1891 = vadd.f32 %v1819, %v1859
    %v1892 = vadd.f32 %v1820, %v1858
    %v1893 = vadd.f32 %v1821, %v1862
    %v1894 = vadd.f32 %v1822, %v1861
    %v1895 = vsel %vm1245, %v1880, -inf
    %v1896 = vmax.f32 %v1879, %v1895
    %v1897 = vrot.slane %v1896, 4
    %v1898 = vmax.f32 %v1896, %v1897
    %v1899 = vrot.slane %v1898, 2
    %v1900 = vmax.f32 %v1898, %v1899
    %v1901 = vrot.slane %v1900, 1
    %v1902 = vmax.f32 %v1900, %v1901
    %v1903 = vsel %vm1245, %v1882, -inf
    %v1904 = vmax.f32 %v1881, %v1903
    %v1905 = vrot.slane %v1904, 4
    %v1906 = vmax.f32 %v1904, %v1905
    %v1907 = vrot.slane %v1906, 2
    %v1908 = vmax.f32 %v1906, %v1907
    %v1909 = vrot.slane %v1908, 1
    %v1910 = vmax.f32 %v1908, %v1909
    %v1911 = vsel %vm1245, %v1884, -inf
    %v1912 = vmax.f32 %v1883, %v1911
    %v1913 = vrot.slane %v1912, 4
    %v1914 = vmax.f32 %v1912, %v1913
    %v1915 = vrot.slane %v1914, 2
    %v1916 = vmax.f32 %v1914, %v1915
    %v1917 = vrot.slane %v1916, 1
    %v1918 = vmax.f32 %v1916, %v1917
    %v1919 = vsel %vm1245, %v1886, -inf
    %v1920 = vmax.f32 %v1885, %v1919
    %v1921 = vrot.slane %v1920, 4
    %v1922 = vmax.f32 %v1920, %v1921
    %v1923 = vrot.slane %v1922, 2
    %v1924 = vmax.f32 %v1922, %v1923
    %v1925 = vrot.slane %v1924, 1
    %v1926 = vmax.f32 %v1924, %v1925
    %v1927 = vsel %vm1245, %v1888, -inf
    %v1928 = vmax.f32 %v1887, %v1927
    %v1929 = vrot.slane %v1928, 4
    %v1930 = vmax.f32 %v1928, %v1929
    %v1931 = vrot.slane %v1930, 2
    %v1932 = vmax.f32 %v1930, %v1931
    %v1933 = vrot.slane %v1932, 1
    %v1934 = vmax.f32 %v1932, %v1933
    %v1935 = vsel %vm1245, %v1890, -inf
    %v1936 = vmax.f32 %v1889, %v1935
    %v1937 = vrot.slane %v1936, 4
    %v1938 = vmax.f32 %v1936, %v1937
    %v1939 = vrot.slane %v1938, 2
    %v1940 = vmax.f32 %v1938, %v1939
    %v1941 = vrot.slane %v1940, 1
    %v1942 = vmax.f32 %v1940, %v1941
    %v1943 = vsel %vm1245, %v1892, -inf
    %v1944 = vmax.f32 %v1891, %v1943
    %v1945 = vrot.slane %v1944, 4
    %v1946 = vmax.f32 %v1944, %v1945
    %v1947 = vrot.slane %v1946, 2
    %v1948 = vmax.f32 %v1946, %v1947
    %v1949 = vrot.slane %v1948, 1
    %v1950 = vmax.f32 %v1948, %v1949
    %v1951 = vsel %vm1245, %v1894, -inf
    %v1952 = vmax.f32 %v1893, %v1951
    %v1953 = vrot.slane %v1952, 4
    %v1954 = vmax.f32 %v1952, %v1953
    %v1955 = vrot.slane %v1954, 2
    %v1956 = vmax.f32 %v1954, %v1955
    %v1957 = vrot.slane %v1956, 1
    %v1958 = vmax.f32 %v1956, %v1957
    %vm1967 = vcmask 1041409
    %v1968 = vsel %vm1967, %v1262, %v1253
    %vm1969 = vcmask 1042434
    %v1970 = vsel %vm1969, %v1271, %v1968
    %vm1971 = vcmask 1043459
    %v1972 = vsel %vm1971, %v1280, %v1970
    %vm1973 = vcmask 1044484
    %v1974 = vsel %vm1973, %v1289, %v1972
    %vm1975 = vcmask 1045509
    %v1976 = vsel %vm1975, %v1298, %v1974
    %vm1977 = vcmask 1046534
    %v1978 = vsel %vm1977, %v1307, %v1976
    %vm1979 = vcmask 1047559
    %v1980 = vsel %vm1979, %v1316, %v1978
    %v1990 = vsel %vm1967, %v1552, %v1543
    %v1991 = vsel %vm1969, %v1561, %v1990
    %v1992 = vsel %vm1971, %v1570, %v1991
    %v1993 = vsel %vm1973, %v1579, %v1992
    %v1994 = vsel %vm1975, %v1588, %v1993
    %v1995 = vsel %vm1977, %v1597, %v1994
    %v1996 = vsel %vm1979, %v1606, %v1995
    %v2006 = vsel %vm1967, %v1910, %v1902
    %v2007 = vsel %vm1969, %v1918, %v2006
    %v2008 = vsel %vm1971, %v1926, %v2007
    %v2009 = vsel %vm1973, %v1934, %v2008
    %v2010 = vsel %vm1975, %v1942, %v2009
    %v2011 = vsel %vm1977, %v1950, %v2010
    %v2012 = vsel %vm1979, %v1958, %v2011
    %v2014 = vld [vmem:[%s2] sm:$0x7]
    %v2016 = vlaneseq
    %v2017 = vshrl.u32 %v2016, 7
    %v2018 = vsub.s32 0, %v2017
    %v2019 = vrot.slane %v2014, %v2018
    %v2020 = vlaneseq
    %v2021 = vshrl.u32 %v2020, 7
    %v2022 = vsub.s32 1, %v2021
    %v2023 = vrot.slane %v2014, %v2022
    %v2024 = vlaneseq
    %v2025 = vshrl.u32 %v2024, 7
    %v2026 = vsub.s32 2, %v2025
    %v2027 = vrot.slane %v2014, %v2026
    %v2031 = vadd.f32 %v1980, %v2019
    %v2032 = vadd.f32 %v1996, %v2023
    %v2033 = vadd.f32 %v2012, %v2027
    %v2034 = vmax.f32 %v2031, 0.0
    %v2035 = vmax.f32 %v2032, 0.0
    %v2036 = vmax.f32 %v2033, 0.0
    %v2037 = vpack.c.bf16 %v2034, %v2034
    %v2038 = vpack.c.bf16 %v2035, %v2035
    %v2039 = vpack.c.bf16 %v2036, %v2036
    %v2040 = vld [vmem:[#allocation5] sm:$0xf]
    %v2041 = vld [vmem:[#allocation5 + $0x4] sm:$0xf]
    %v2042 = vld [vmem:[#allocation5 + $0x8] sm:$0xf]
    %v2043 = vld [vmem:[#allocation5 + $0xc] sm:$0xf]
    %v2044 = vld [vmem:[#allocation5 + $0x10] sm:$0xf]
    %v2045 = vld [vmem:[#allocation5 + $0x14] sm:$0xf]
    %v2046 = vld [vmem:[#allocation5 + $0x18] sm:$0xf]
    %v2047 = vld [vmem:[#allocation5 + $0x1c] sm:$0xf]
    %v2048 = vld [vmem:[#allocation5 + $0x20] sm:$0xf]
    %v2049 = vld [vmem:[#allocation5 + $0x24] sm:$0xf]
    %v2050 = vld [vmem:[#allocation5 + $0x28] sm:$0xf]
    %v2051 = vld [vmem:[#allocation5 + $0x2c] sm:$0xf]
    %v2052 = vld [vmem:[#allocation5 + $0x30] sm:$0xf]
    %v2053 = vld [vmem:[#allocation5 + $0x34] sm:$0xf]
    %v2054 = vld [vmem:[#allocation5 + $0x38] sm:$0xf]
    %v2055 = vld [vmem:[#allocation5 + $0x3c] sm:$0xf]
    %v2056 = vld [vmem:[#allocation5 + $0x40] sm:$0xf]
    %v2057 = vld [vmem:[#allocation5 + $0x44] sm:$0xf]
    %v2058 = vld [vmem:[#allocation5 + $0x48] sm:$0xf]
    %v2059 = vld [vmem:[#allocation5 + $0x4c] sm:$0xf]
    %v2060 = vld [vmem:[#allocation5 + $0x50] sm:$0xf]
    %v2061 = vld [vmem:[#allocation5 + $0x54] sm:$0xf]
    %v2062 = vld [vmem:[#allocation5 + $0x58] sm:$0xf]
    %v2063 = vld [vmem:[#allocation5 + $0x5c] sm:$0xf]
    %v2064 = vld [vmem:[#allocation5 + $0x60] sm:$0xf]
    %v2065 = vld [vmem:[#allocation5 + $0x64] sm:$0xf]
    %v2066 = vld [vmem:[#allocation5 + $0x68] sm:$0xf]
    %v2067 = vld [vmem:[#allocation5 + $0x6c] sm:$0xf]
    %v2068 = vld [vmem:[#allocation5 + $0x70] sm:$0xf]
    %v2069 = vld [vmem:[#allocation5 + $0x74] sm:$0xf]
    %v2070 = vld [vmem:[#allocation5 + $0x78] sm:$0xf]
    %v2071 = vld [vmem:[#allocation5 + $0x7c] sm:$0xf]
    %v2072 = vld [vmem:[#allocation5 + $0x80] sm:$0xf]
    %v2073 = vld [vmem:[#allocation5 + $0x84] sm:$0xf]
    %v2074 = vld [vmem:[#allocation5 + $0x88] sm:$0xf]
    %v2075 = vld [vmem:[#allocation5 + $0x8c] sm:$0xf]
    %v2076 = vld [vmem:[#allocation5 + $0x90] sm:$0xf]
    %v2077 = vld [vmem:[#allocation5 + $0x94] sm:$0xf]
    %v2078 = vld [vmem:[#allocation5 + $0x98] sm:$0xf]
    %v2079 = vld [vmem:[#allocation5 + $0x9c] sm:$0xf]
    %v2080 = vld [vmem:[#allocation5 + $0xa0] sm:$0xf]
    %v2081 = vld [vmem:[#allocation5 + $0xa4] sm:$0xf]
    %v2082 = vld [vmem:[#allocation5 + $0xa8] sm:$0xf]
    %v2083 = vld [vmem:[#allocation5 + $0xac] sm:$0xf]
    %v2084 = vld [vmem:[#allocation5 + $0xb0] sm:$0xf]
    %v2085 = vld [vmem:[#allocation5 + $0xb4] sm:$0xf]
    %v2086 = vld [vmem:[#allocation5 + $0xb8] sm:$0xf]
    %v2087 = vld [vmem:[#allocation5 + $0xbc] sm:$0xf]
    %v2088 = vld [vmem:[%s4] sm:$0x1]
    %v2090 = vlaneseq
    %v2091 = vshrl.u32 %v2090, 7
    %v2092 = vsub.s32 0, %v2091
    %v2093 = vrot.slane %v2088, %v2092
    %v2143 = vunpack.c.l.b16 %v2040
    %v2144 = vunpack.c.l.b16 %v2041
    %v2145 = vunpack.c.l.b16 %v2042
    %v2146 = vunpack.c.l.b16 %v2043
    %v2147 = vunpack.c.l.b16 %v2044
    %v2148 = vunpack.c.l.b16 %v2045
    %v2149 = vunpack.c.l.b16 %v2046
    %v2150 = vunpack.c.l.b16 %v2047
    %v2151 = vunpack.c.l.b16 %v2048
    %v2152 = vunpack.c.l.b16 %v2049
    %v2153 = vunpack.c.l.b16 %v2050
    %v2154 = vunpack.c.l.b16 %v2051
    %v2155 = vunpack.c.l.b16 %v2052
    %v2156 = vunpack.c.l.b16 %v2053
    %v2157 = vunpack.c.l.b16 %v2054
    %v2158 = vunpack.c.l.b16 %v2055
    %v2159 = vunpack.c.l.b16 %v2056
    %v2160 = vunpack.c.l.b16 %v2057
    %v2161 = vunpack.c.l.b16 %v2058
    %v2162 = vunpack.c.l.b16 %v2059
    %v2163 = vunpack.c.l.b16 %v2060
    %v2164 = vunpack.c.l.b16 %v2061
    %v2165 = vunpack.c.l.b16 %v2062
    %v2166 = vunpack.c.l.b16 %v2063
    %v2167 = vunpack.c.l.b16 %v2064
    %v2168 = vunpack.c.l.b16 %v2065
    %v2169 = vunpack.c.l.b16 %v2066
    %v2170 = vunpack.c.l.b16 %v2067
    %v2171 = vunpack.c.l.b16 %v2068
    %v2172 = vunpack.c.l.b16 %v2069
    %v2173 = vunpack.c.l.b16 %v2070
    %v2174 = vunpack.c.l.b16 %v2071
    %v2175 = vunpack.c.l.b16 %v2072
    %v2176 = vunpack.c.l.b16 %v2073
    %v2177 = vunpack.c.l.b16 %v2074
    %v2178 = vunpack.c.l.b16 %v2075
    %v2179 = vunpack.c.l.b16 %v2076
    %v2180 = vunpack.c.l.b16 %v2077
    %v2181 = vunpack.c.l.b16 %v2078
    %v2182 = vunpack.c.l.b16 %v2079
    %v2183 = vunpack.c.l.b16 %v2080
    %v2184 = vunpack.c.l.b16 %v2081
    %v2185 = vunpack.c.l.b16 %v2082
    %v2186 = vunpack.c.l.b16 %v2083
    %v2187 = vunpack.c.l.b16 %v2084
    %v2188 = vunpack.c.l.b16 %v2085
    %v2189 = vunpack.c.l.b16 %v2086
    %v2190 = vunpack.c.l.b16 %v2087
    %v2191 = vpack.c.b16 %v2144, %v2143
    %v2192 = vpack.c.b16 %v2146, %v2145
    %v2193 = vpack.c.b16 %v2148, %v2147
    %v2194 = vpack.c.b16 %v2150, %v2149
    %v2195 = vpack.c.b16 %v2152, %v2151
    %v2196 = vpack.c.b16 %v2154, %v2153
    %v2197 = vpack.c.b16 %v2156, %v2155
    %v2198 = vpack.c.b16 %v2158, %v2157
    %v2199 = vpack.c.b16 %v2160, %v2159
    %v2200 = vpack.c.b16 %v2162, %v2161
    %v2201 = vpack.c.b16 %v2164, %v2163
    %v2202 = vpack.c.b16 %v2166, %v2165
    %v2203 = vpack.c.b16 %v2168, %v2167
    %v2204 = vpack.c.b16 %v2170, %v2169
    %v2205 = vpack.c.b16 %v2172, %v2171
    %v2206 = vpack.c.b16 %v2174, %v2173
    %v2207 = vpack.c.b16 %v2176, %v2175
    %v2208 = vpack.c.b16 %v2178, %v2177
    %v2209 = vpack.c.b16 %v2180, %v2179
    %v2210 = vpack.c.b16 %v2182, %v2181
    %v2211 = vpack.c.b16 %v2184, %v2183
    %v2212 = vpack.c.b16 %v2186, %v2185
    %v2213 = vpack.c.b16 %v2188, %v2187
    %v2214 = vpack.c.b16 %v2190, %v2189
    %2239 = vmatprep.subr.bf16.mxu0 0
    %2240 = vmatpush1.bf16.msra.mxu0 %v2198
    %2241 = vmatprep.subr.bf16.mxu0 0
    %2242 = vmatpush1.bf16.msra.mxu0 %v2197
    %2243 = vmatprep.subr.bf16.mxu0 0
    %2244 = vmatpush1.bf16.msra.mxu0 %v2196
    %2245 = vmatprep.subr.bf16.mxu0 0
    %2246 = vmatpush1.bf16.msra.mxu0 %v2195
    %2247 = vmatprep.subr.bf16.mxu0 0
    %2248 = vmatpush1.bf16.msra.mxu0 %v2194
    %2249 = vmatprep.subr.bf16.mxu0 0
    %2250 = vmatpush1.bf16.msra.mxu0 %v2193
    %2251 = vmatprep.subr.bf16.mxu0 0
    %2252 = vmatpush1.bf16.msra.mxu0 %v2192
    %2253 = vmatprep.subr.bf16.mxu0 0
    %2254 = vmatpush1.bf16.msra.mxu0 %v2191
    %2255 = vmatprep.subr.bf16.mxu0 0
    %2256 = vmatpush2.bf16.msra.mxu0 %v2206
    %2257 = vmatprep.subr.bf16.mxu0 0
    %2258 = vmatpush2.bf16.msra.mxu0 %v2205
    %2259 = vmatprep.subr.bf16.mxu0 0
    %2260 = vmatpush2.bf16.msra.mxu0 %v2204
    %2261 = vmatprep.subr.bf16.mxu0 0
    %2262 = vmatpush2.bf16.msra.mxu0 %v2203
    %2263 = vmatprep.subr.bf16.mxu0 0
    %2264 = vmatpush2.bf16.msra.mxu0 %v2202
    %2265 = vmatprep.subr.bf16.mxu0 0
    %2266 = vmatpush2.bf16.msra.mxu0 %v2201
    %2267 = vmatprep.subr.bf16.mxu0 0
    %2268 = vmatpush2.bf16.msra.mxu0 %v2200
    %2269 = vmatprep.subr.bf16.mxu0 0
    %2270 = vmatpush2.bf16.msra.mxu0 %v2199
    %2271 = vmatprep.mubr.bf16.mxu0 %v2038
    %2272 = vmatmul.mubr.bf16.gmra.mxu0 %v2037
    %v2273 = vpop.f32.mrf.mxu0
    %v2274 = vadd.f32 %v2093, %v2273
    %v2275 = vpop.f32.mrf.mxu0
    %v2276 = vpop.f32.mrf.mxu0
    %v2277 = vpop.f32.mrf.mxu0
    %2278 = vdwg.mxu0
    %2279 = vmatprep.subr.bf16.mxu0 0
    %2280 = vmatpush1.bf16.msra.mxu0 %v2214
    %2281 = vmatprep.subr.bf16.mxu0 0
    %2282 = vmatpush1.bf16.msra.mxu0 %v2213
    %2283 = vmatprep.subr.bf16.mxu0 0
    %2284 = vmatpush1.bf16.msra.mxu0 %v2212
    %2285 = vmatprep.subr.bf16.mxu0 0
    %2286 = vmatpush1.bf16.msra.mxu0 %v2211
    %2287 = vmatprep.subr.bf16.mxu0 0
    %2288 = vmatpush1.bf16.msra.mxu0 %v2210
    %2289 = vmatprep.subr.bf16.mxu0 0
    %2290 = vmatpush1.bf16.msra.mxu0 %v2209
    %2291 = vmatprep.subr.bf16.mxu0 0
    %2292 = vmatpush1.bf16.msra.mxu0 %v2208
    %2293 = vmatprep.subr.bf16.mxu0 0
    %2294 = vmatpush1.bf16.msra.mxu0 %v2207
    %2295 = vmatprep.subr.bf16.mxu0 0
    %2296 = vmatpush2.bf16.msra.mxu0 0
    %2297 = vmatprep.subr.bf16.mxu0 0
    %2298 = vmatpush2.bf16.msra.mxu0 0
    %2299 = vmatprep.subr.bf16.mxu0 0
    %2300 = vmatpush2.bf16.msra.mxu0 0
    %2301 = vmatprep.subr.bf16.mxu0 0
    %2302 = vmatpush2.bf16.msra.mxu0 0
    %2303 = vmatprep.subr.bf16.mxu0 0
    %2304 = vmatpush2.bf16.msra.mxu0 0
    %2305 = vmatprep.subr.bf16.mxu0 0
    %2306 = vmatpush2.bf16.msra.mxu0 0
    %2307 = vmatprep.subr.bf16.mxu0 0
    %2308 = vmatpush2.bf16.msra.mxu0 0
    %2309 = vmatprep.subr.bf16.mxu0 0
    %2310 = vmatpush2.bf16.msra.mxu0 0
    %2311 = vmatprep.mubr.bf16.mxu0 0
    %2312 = vmatmul.mubr.bf16.gmra.mxu0 %v2039
    %v2313 = vpop.f32.mrf.mxu0
    %v2314 = vadd.f32 %v2274, %v2313
    %v2315 = vpop.f32.mrf.mxu0
    %v2316 = vpop.f32.mrf.mxu0
    %v2317 = vpop.f32.mrf.mxu0
    %2318 = vdwg.mxu0
    %2319 = vst [vmem:[#allocation7] sm:$0xff] %v2314
    // Predicated region
    $region30: #{tpu_custom_call.1} parent=1 // pred_check
      _
    $region31: #{tpu_custom_call.1} parent=1 // pred_check_branch
      %2321 = sbr.rel (0) target = $region33
    $region32: #{tpu_custom_call.1} parent=1 // pred_region
      %s2323 = ssub.s32 128, 128
      %2324 = vsyncadd [#allocation4], %s2323
      %s2326 = sshll.u32 [#allocation7], 4
      %s2327 = int_to_ptr.vmem [resolvable:$true] %s2326
      %2329 = dma.vmem_to_hbm [thread:$0]  %s2327, 128, %s5, [#allocation4]
    $region33: #{tpu_custom_call.1} parent=1 // pred_fallthru
      _
    // Predicated region
    $region34: #{tpu_custom_call.1} parent=1 // pred_check
      _
    $region35: #{tpu_custom_call.1} parent=1 // pred_check_branch
      %2331 = sbr.rel (0) target = $region37
    $region36: #{tpu_custom_call.1} parent=1 // pred_region
      %2332 = dma.done [#allocation4], 128
    $region37: #{tpu_custom_call.1} parent=1 // pred_fallthru
      _
    %2333 = vsyncpa [#allocation3], 1
    %2334 = vsyncpa [#allocation6], 1
    %2335 = vsyncpa [#allocation4], 1

</llo_original>
